<compile_context>
chip_gen: v5e
topology: v5e:2x2
jax: 0.10.0
libtpu: 0.0.40
codegen_flags: <defaults>
</compile_context>

<pallas_src>
import functools

import jax
import jax.numpy as jnp
from jax import lax
from jax.experimental import pallas as pl
from jax.experimental.pallas import tpu as pltpu

LAYER_SIZES = [7, 24, 48, 24, 24, 1]  # in_features ... out


def _mish(x):
    # Mish(x) = x * tanh(softplus(x)) = x * (e^2x + 2 e^x) / (e^2x + 2 e^x + 2)
    # Single exp + approx EUP reciprocal; clamp the exp argument so it never
    # overflows (also neutralizes ragged-tail garbage), and return x directly
    # for large x (tanh(softplus(x)) == 1 to fp32 precision for x > 20).
    e = jnp.exp(jnp.minimum(x, 20.0))
    n = e * (e + 2.0)
    y = x * n * pl.reciprocal(n + 2.0, approx=True)
    return jnp.where(x > 20.0, x, y)


def mlp_kernel(x_ref,
               w1_ref, b1_ref,
               w2_ref, b2_ref,
               w3_ref, b3_ref,
               w4_ref, b4_ref,
               w5_ref, b5_ref,
               o_ref):
    """Whole forward pass for one batch tile, entirely in VMEM.

    Layout:
      x_ref : (tile, 7)      -- contiguous HBM block, no wrapper transpose
      wK_ref: (out, in), bK_ref: (out, 1)
      o_ref : (1, tile)      -- lane-dense output store
    All activations are (out<=48, tile): batch on the 128-lane axis.
    """
    # First layer: contract over the 7-feature axis of both operands
    # ((24,7) x (tile,7) -> (24,tile)); puts batch on lanes for everything
    # downstream.
    h = lax.dot_general(
        w1_ref[...], x_ref[...],
        dimension_numbers=(((1,), (1,)), ((), ())),
        preferred_element_type=jnp.float32) + b1_ref[...]
    h = _mish(h)

    # hidden2..hidden4: Linear + Mish (+ Dropout == identity in eval mode)
    h = _mish(jnp.dot(w2_ref[...], h, preferred_element_type=jnp.float32) + b2_ref[...])
    h = _mish(jnp.dot(w3_ref[...], h, preferred_element_type=jnp.float32) + b3_ref[...])
    h = _mish(jnp.dot(w4_ref[...], h, preferred_element_type=jnp.float32) + b4_ref[...])

    # output layer: plain Linear -> lane-dense (1, tile) store
    o_ref[...] = jnp.dot(w5_ref[...], h, preferred_element_type=jnp.float32) + b5_ref[...]


def init_params(key):
    """Deterministic parameter init matching PyTorch (xavier-uniform W, zero b).

    Weights are stored PyTorch-style as (out_features, in_features); biases as
    (out_features, 1) so they broadcast along the lane (batch) axis in-kernel.
    """
    params = []
    for i in range(len(LAYER_SIZES) - 1):
        fan_in, fan_out = LAYER_SIZES[i], LAYER_SIZES[i + 1]
        key, wkey = jax.random.split(key)
        limit = jnp.sqrt(6.0 / (fan_in + fan_out))
        w = jax.random.uniform(wkey, (fan_out, fan_in), jnp.float32, -limit, limit)
        b = jnp.zeros((fan_out, 1), jnp.float32)
        params.append((w, b))
    return params


def _round_up(n, m):
    return ((n + m - 1) // m) * m


@functools.partial(jax.jit, static_argnames=("batch_tile",))
def kaoshung_features7_nn(x, params, batch_tile=8192):
    """Runs the full MLP forward via a single Pallas kernel.

    x: (B, 7) float32 (any B; ragged tail tiles handled by Pallas).
    params: list of (W[out,in], b[out,1]) pairs.
    returns: (B, 1) float32.
    """
    B, F = x.shape
    assert F == LAYER_SIZES[0]

    # Effective tile: big enough to amortize the ~0.35 us/step grid overhead,
    # but capped so (a) two tiles exist whenever possible (v7x megacore split)
    # and (b) the VMEM footprint stays inside v7x's 64 MiB physical VMEM.
    tile = max(512, min(batch_tile, _round_up(-(-B // 2), 512)))
    n_tiles = pl.cdiv(B, tile)

    flat_params = [p for pair in params for p in pair]

    # Block over batch only; all (tiny) weights are fully resident every step.
    x_spec = pl.BlockSpec((tile, F), lambda i: (i, 0))
    param_specs = []
    for w, b in params:
        param_specs.append(pl.BlockSpec(w.shape, lambda i: (0, 0)))
        param_specs.append(pl.BlockSpec(b.shape, lambda i: (0, 0)))
    out_spec = pl.BlockSpec((1, tile), lambda i: (0, i))

    # VMEM budget (generous): x block is lane-padded 7 -> 128 in VMEM and
    # double-buffered; activations + Mish temporaries bounded by ~6 f32
    # (128, tile)-equivalents; plus weights/output/slack.  Clamped to stay
    # under v7x's 64 MiB physical VMEM while exceeding every generation's
    # scoped default.
    vmem_bytes = 2 * tile * 128 * 4          # double-buffered x input block
    vmem_bytes += 6 * tile * 128 * 4         # activations + temporaries
    vmem_bytes += 2 << 20                    # weights, biases, output, slack
    vmem_limit = max(32 << 20, min(vmem_bytes, 60 << 20))

    out = pl.pallas_call(
        mlp_kernel,
        out_shape=jax.ShapeDtypeStruct((1, B), jnp.float32),
        grid_spec=pltpu.PrefetchScalarGridSpec(
            num_scalar_prefetch=0,
            grid=(n_tiles,),
            in_specs=[x_spec] + param_specs,
            out_specs=out_spec,
        ),
        compiler_params=pltpu.CompilerParams(
            dimension_semantics=("parallel",),
            vmem_limit_bytes=vmem_limit),
    )(x, *flat_params)

    return out.reshape(B, 1)


def reference_forward(x, params):
    """Pure-JAX reference of the PyTorch forward (eval mode), stable Mish."""
    h = x
    for i, (w, b) in enumerate(params):
        h = h @ w.T + b[:, 0]
        if i < len(params) - 1:
            h = h * jnp.tanh(jnp.logaddexp(h, 0.0))  # exact Mish
    return h


if __name__ == "__main__":
    key = jax.random.PRNGKey(0)
    pkey, xkey = jax.random.split(key)

    params = init_params(pkey)
    batch = 1000  # non-multiple of the tile -> exercises the ragged last block
    x = jax.random.normal(xkey, (batch, LAYER_SIZES[0]), jnp.float32)

    out = kaoshung_features7_nn(x, params)
    out = jax.block_until_ready(out)

    ref = reference_forward(x, params)
    assert out.shape == (batch, 1), out.shape
    # Tolerance accounts for the approximate EUP reciprocal in the fast Mish.
    assert jnp.allclose(out, ref, atol=2e-3, rtol=2e-3), (out, ref)

    print("KERNEL_OK")
</pallas_src>

<mosaic_0001>
module attributes {stable_mosaic.version = 11 : i64} {
  func.func @mlp_kernel(%arg0: i32, %arg1: memref<512x7xf32, #tpu.memory_space<vmem>>, %arg2: memref<24x7xf32, #tpu.memory_space<vmem>>, %arg3: memref<24x1xf32, #tpu.memory_space<vmem>>, %arg4: memref<48x24xf32, #tpu.memory_space<vmem>>, %arg5: memref<48x1xf32, #tpu.memory_space<vmem>>, %arg6: memref<24x48xf32, #tpu.memory_space<vmem>>, %arg7: memref<24x1xf32, #tpu.memory_space<vmem>>, %arg8: memref<24x24xf32, #tpu.memory_space<vmem>>, %arg9: memref<24x1xf32, #tpu.memory_space<vmem>>, %arg10: memref<1x24xf32, #tpu.memory_space<vmem>>, %arg11: memref<1x1xf32, #tpu.memory_space<vmem>>, %arg12: memref<1x512xf32, #tpu.memory_space<vmem>>) attributes {dimension_semantics = [#tpu.dimension_semantics<parallel>], iteration_bounds = array<i64: 2>, scalar_prefetch = 0 : i64, scratch_operands = 0 : i64, tpu.core_type = #tpu.core_type<tc>, window_params = [{transform_indices = @transform_0, window_bounds = array<i64: 512, 7>}, {pipeline_mode = #tpu.pipeline_mode<synchronous>, transform_indices = @transform_1, window_bounds = array<i64: 24, 7>}, {pipeline_mode = #tpu.pipeline_mode<synchronous>, transform_indices = @transform_2, window_bounds = array<i64: 24, 1>}, {pipeline_mode = #tpu.pipeline_mode<synchronous>, transform_indices = @transform_3, window_bounds = array<i64: 48, 24>}, {pipeline_mode = #tpu.pipeline_mode<synchronous>, transform_indices = @transform_4, window_bounds = array<i64: 48, 1>}, {pipeline_mode = #tpu.pipeline_mode<synchronous>, transform_indices = @transform_5, window_bounds = array<i64: 24, 48>}, {pipeline_mode = #tpu.pipeline_mode<synchronous>, transform_indices = @transform_6, window_bounds = array<i64: 24, 1>}, {pipeline_mode = #tpu.pipeline_mode<synchronous>, transform_indices = @transform_7, window_bounds = array<i64: 24, 24>}, {pipeline_mode = #tpu.pipeline_mode<synchronous>, transform_indices = @transform_8, window_bounds = array<i64: 24, 1>}, {pipeline_mode = #tpu.pipeline_mode<synchronous>, transform_indices = @transform_9, window_bounds = array<i64: 1, 24>}, {pipeline_mode = #tpu.pipeline_mode<synchronous>, transform_indices = @transform_10, window_bounds = array<i64: 1, 1>}, {transform_indices = @transform_11, window_bounds = array<i64: 1, 512>}]} {
    %c0 = arith.constant 0 : index
    %c0_0 = arith.constant 0 : index
    %0 = vector.load %arg2[%c0, %c0_0] : memref<24x7xf32, #tpu.memory_space<vmem>>, vector<24x7xf32>
    %c0_1 = arith.constant 0 : index
    %c0_2 = arith.constant 0 : index
    %1 = vector.load %arg1[%c0_1, %c0_2] : memref<512x7xf32, #tpu.memory_space<vmem>>, vector<512x7xf32>
    %cst = arith.constant dense<0.000000e+00> : vector<24x512xf32>
    %2 = tpu.matmul %0, %1, %cst {dimension_numbers = #tpu.dot_dimension_numbers<[1], [1], [0], [0], [0, 0, 1, 0], [], []>} : vector<24x7xf32>, vector<512x7xf32>, vector<24x512xf32> -> vector<24x512xf32>
    %c0_3 = arith.constant 0 : index
    %c0_4 = arith.constant 0 : index
    %3 = vector.load %arg3[%c0_3, %c0_4] : memref<24x1xf32, #tpu.memory_space<vmem>>, vector<24x1xf32>
    %4 = vector.broadcast %3 : vector<24x1xf32> to vector<24x512xf32>
    %5 = arith.addf %2, %4 : vector<24x512xf32>
    %cst_5 = arith.constant 2.000000e+01 : f32
    %6 = vector.broadcast %cst_5 : f32 to vector<24x512xf32>
    %7 = arith.minimumf %5, %6 : vector<24x512xf32>
    %8 = math.exp %7 : vector<24x512xf32>
    %cst_6 = arith.constant 2.000000e+00 : f32
    %9 = vector.broadcast %cst_6 : f32 to vector<24x512xf32>
    %10 = arith.addf %8, %9 : vector<24x512xf32>
    %11 = arith.mulf %8, %10 : vector<24x512xf32>
    %12 = arith.mulf %5, %11 : vector<24x512xf32>
    %cst_7 = arith.constant 2.000000e+00 : f32
    %13 = vector.broadcast %cst_7 : f32 to vector<24x512xf32>
    %14 = arith.addf %11, %13 : vector<24x512xf32>
    %15 = tpu.reciprocal %14 {approx = true} : vector<24x512xf32> -> vector<24x512xf32>
    %16 = arith.mulf %12, %15 : vector<24x512xf32>
    %cst_8 = arith.constant 2.000000e+01 : f32
    %17 = vector.broadcast %cst_8 : f32 to vector<24x512xf32>
    %18 = arith.cmpf ogt, %5, %17 : vector<24x512xf32>
    %19 = arith.select %18, %5, %16 : vector<24x512xi1>, vector<24x512xf32>
    %c0_9 = arith.constant 0 : index
    %c0_10 = arith.constant 0 : index
    %20 = vector.load %arg4[%c0_9, %c0_10] : memref<48x24xf32, #tpu.memory_space<vmem>>, vector<48x24xf32>
    %cst_11 = arith.constant dense<0.000000e+00> : vector<48x512xf32>
    %21 = tpu.matmul %20, %19, %cst_11 {dimension_numbers = #tpu.dot_dimension_numbers<[1], [0], [0], [1], [0, 0, 1, 1], [], []>} : vector<48x24xf32>, vector<24x512xf32>, vector<48x512xf32> -> vector<48x512xf32>
    %c0_12 = arith.constant 0 : index
    %c0_13 = arith.constant 0 : index
    %22 = vector.load %arg5[%c0_12, %c0_13] : memref<48x1xf32, #tpu.memory_space<vmem>>, vector<48x1xf32>
    %23 = vector.broadcast %22 : vector<48x1xf32> to vector<48x512xf32>
    %24 = arith.addf %21, %23 : vector<48x512xf32>
    %cst_14 = arith.constant 2.000000e+01 : f32
    %25 = vector.broadcast %cst_14 : f32 to vector<48x512xf32>
    %26 = arith.minimumf %24, %25 : vector<48x512xf32>
    %27 = math.exp %26 : vector<48x512xf32>
    %cst_15 = arith.constant 2.000000e+00 : f32
    %28 = vector.broadcast %cst_15 : f32 to vector<48x512xf32>
    %29 = arith.addf %27, %28 : vector<48x512xf32>
    %30 = arith.mulf %27, %29 : vector<48x512xf32>
    %31 = arith.mulf %24, %30 : vector<48x512xf32>
    %cst_16 = arith.constant 2.000000e+00 : f32
    %32 = vector.broadcast %cst_16 : f32 to vector<48x512xf32>
    %33 = arith.addf %30, %32 : vector<48x512xf32>
    %34 = tpu.reciprocal %33 {approx = true} : vector<48x512xf32> -> vector<48x512xf32>
    %35 = arith.mulf %31, %34 : vector<48x512xf32>
    %cst_17 = arith.constant 2.000000e+01 : f32
    %36 = vector.broadcast %cst_17 : f32 to vector<48x512xf32>
    %37 = arith.cmpf ogt, %24, %36 : vector<48x512xf32>
    %38 = arith.select %37, %24, %35 : vector<48x512xi1>, vector<48x512xf32>
    %c0_18 = arith.constant 0 : index
    %c0_19 = arith.constant 0 : index
    %39 = vector.load %arg6[%c0_18, %c0_19] : memref<24x48xf32, #tpu.memory_space<vmem>>, vector<24x48xf32>
    %cst_20 = arith.constant dense<0.000000e+00> : vector<24x512xf32>
    %40 = tpu.matmul %39, %38, %cst_20 {dimension_numbers = #tpu.dot_dimension_numbers<[1], [0], [0], [1], [0, 0, 1, 1], [], []>} : vector<24x48xf32>, vector<48x512xf32>, vector<24x512xf32> -> vector<24x512xf32>
    %c0_21 = arith.constant 0 : index
    %c0_22 = arith.constant 0 : index
    %41 = vector.load %arg7[%c0_21, %c0_22] : memref<24x1xf32, #tpu.memory_space<vmem>>, vector<24x1xf32>
    %42 = vector.broadcast %41 : vector<24x1xf32> to vector<24x512xf32>
    %43 = arith.addf %40, %42 : vector<24x512xf32>
    %cst_23 = arith.constant 2.000000e+01 : f32
    %44 = vector.broadcast %cst_23 : f32 to vector<24x512xf32>
    %45 = arith.minimumf %43, %44 : vector<24x512xf32>
    %46 = math.exp %45 : vector<24x512xf32>
    %cst_24 = arith.constant 2.000000e+00 : f32
    %47 = vector.broadcast %cst_24 : f32 to vector<24x512xf32>
    %48 = arith.addf %46, %47 : vector<24x512xf32>
    %49 = arith.mulf %46, %48 : vector<24x512xf32>
    %50 = arith.mulf %43, %49 : vector<24x512xf32>
    %cst_25 = arith.constant 2.000000e+00 : f32
    %51 = vector.broadcast %cst_25 : f32 to vector<24x512xf32>
    %52 = arith.addf %49, %51 : vector<24x512xf32>
    %53 = tpu.reciprocal %52 {approx = true} : vector<24x512xf32> -> vector<24x512xf32>
    %54 = arith.mulf %50, %53 : vector<24x512xf32>
    %cst_26 = arith.constant 2.000000e+01 : f32
    %55 = vector.broadcast %cst_26 : f32 to vector<24x512xf32>
    %56 = arith.cmpf ogt, %43, %55 : vector<24x512xf32>
    %57 = arith.select %56, %43, %54 : vector<24x512xi1>, vector<24x512xf32>
    %c0_27 = arith.constant 0 : index
    %c0_28 = arith.constant 0 : index
    %58 = vector.load %arg8[%c0_27, %c0_28] : memref<24x24xf32, #tpu.memory_space<vmem>>, vector<24x24xf32>
    %cst_29 = arith.constant dense<0.000000e+00> : vector<24x512xf32>
    %59 = tpu.matmul %58, %57, %cst_29 {dimension_numbers = #tpu.dot_dimension_numbers<[1], [0], [0], [1], [0, 0, 1, 1], [], []>} : vector<24x24xf32>, vector<24x512xf32>, vector<24x512xf32> -> vector<24x512xf32>
    %c0_30 = arith.constant 0 : index
    %c0_31 = arith.constant 0 : index
    %60 = vector.load %arg9[%c0_30, %c0_31] : memref<24x1xf32, #tpu.memory_space<vmem>>, vector<24x1xf32>
    %61 = vector.broadcast %60 : vector<24x1xf32> to vector<24x512xf32>
    %62 = arith.addf %59, %61 : vector<24x512xf32>
    %cst_32 = arith.constant 2.000000e+01 : f32
    %63 = vector.broadcast %cst_32 : f32 to vector<24x512xf32>
    %64 = arith.minimumf %62, %63 : vector<24x512xf32>
    %65 = math.exp %64 : vector<24x512xf32>
    %cst_33 = arith.constant 2.000000e+00 : f32
    %66 = vector.broadcast %cst_33 : f32 to vector<24x512xf32>
    %67 = arith.addf %65, %66 : vector<24x512xf32>
    %68 = arith.mulf %65, %67 : vector<24x512xf32>
    %69 = arith.mulf %62, %68 : vector<24x512xf32>
    %cst_34 = arith.constant 2.000000e+00 : f32
    %70 = vector.broadcast %cst_34 : f32 to vector<24x512xf32>
    %71 = arith.addf %68, %70 : vector<24x512xf32>
    %72 = tpu.reciprocal %71 {approx = true} : vector<24x512xf32> -> vector<24x512xf32>
    %73 = arith.mulf %69, %72 : vector<24x512xf32>
    %cst_35 = arith.constant 2.000000e+01 : f32
    %74 = vector.broadcast %cst_35 : f32 to vector<24x512xf32>
    %75 = arith.cmpf ogt, %62, %74 : vector<24x512xf32>
    %76 = arith.select %75, %62, %73 : vector<24x512xi1>, vector<24x512xf32>
    %c0_36 = arith.constant 0 : index
    %c0_37 = arith.constant 0 : index
    %77 = vector.load %arg10[%c0_36, %c0_37] : memref<1x24xf32, #tpu.memory_space<vmem>>, vector<1x24xf32>
    %cst_38 = arith.constant dense<0.000000e+00> : vector<1x512xf32>
    %78 = tpu.matmul %77, %76, %cst_38 {dimension_numbers = #tpu.dot_dimension_numbers<[1], [0], [0], [1], [0, 0, 1, 1], [], []>} : vector<1x24xf32>, vector<24x512xf32>, vector<1x512xf32> -> vector<1x512xf32>
    %c0_39 = arith.constant 0 : index
    %c0_40 = arith.constant 0 : index
    %79 = vector.load %arg11[%c0_39, %c0_40] : memref<1x1xf32, #tpu.memory_space<vmem>>, vector<1x1xf32>
    %80 = vector.broadcast %79 : vector<1x1xf32> to vector<1x512xf32>
    %81 = arith.addf %78, %80 : vector<1x512xf32>
    %c0_41 = arith.constant 0 : index
    %c0_42 = arith.constant 0 : index
    %82 = vector.load %arg12[%c0_41, %c0_42] : memref<1x512xf32, #tpu.memory_space<vmem>>, vector<1x512xf32>
    tpu.vector_store %arg12[%c0_41, %c0_42], %81 {strides = array<i32>} : memref<1x512xf32, #tpu.memory_space<vmem>>, vector<1x512xf32>,
    return
  }
  func.func @transform_0(%arg0: i32) -> (i32, i32) {
    %c0_i32 = arith.constant 0 : i32
    %c0_i32_0 = arith.constant 0 : i32
    return %arg0, %c0_i32 : i32, i32
  }
  func.func @transform_1(%arg0: i32) -> (i32, i32) {
    %c0_i32 = arith.constant 0 : i32
    %c0_i32_0 = arith.constant 0 : i32
    %c0_i32_1 = arith.constant 0 : i32
    return %c0_i32, %c0_i32_0 : i32, i32
  }
  func.func @transform_2(%arg0: i32) -> (i32, i32) {
    %c0_i32 = arith.constant 0 : i32
    %c0_i32_0 = arith.constant 0 : i32
    %c0_i32_1 = arith.constant 0 : i32
    return %c0_i32, %c0_i32_0 : i32, i32
  }
  func.func @transform_3(%arg0: i32) -> (i32, i32) {
    %c0_i32 = arith.constant 0 : i32
    %c0_i32_0 = arith.constant 0 : i32
    %c0_i32_1 = arith.constant 0 : i32
    return %c0_i32, %c0_i32_0 : i32, i32
  }
  func.func @transform_4(%arg0: i32) -> (i32, i32) {
    %c0_i32 = arith.constant 0 : i32
    %c0_i32_0 = arith.constant 0 : i32
    %c0_i32_1 = arith.constant 0 : i32
    return %c0_i32, %c0_i32_0 : i32, i32
  }
  func.func @transform_5(%arg0: i32) -> (i32, i32) {
    %c0_i32 = arith.constant 0 : i32
    %c0_i32_0 = arith.constant 0 : i32
    %c0_i32_1 = arith.constant 0 : i32
    return %c0_i32, %c0_i32_0 : i32, i32
  }
  func.func @transform_6(%arg0: i32) -> (i32, i32) {
    %c0_i32 = arith.constant 0 : i32
    %c0_i32_0 = arith.constant 0 : i32
    %c0_i32_1 = arith.constant 0 : i32
    return %c0_i32, %c0_i32_0 : i32, i32
  }
  func.func @transform_7(%arg0: i32) -> (i32, i32) {
    %c0_i32 = arith.constant 0 : i32
    %c0_i32_0 = arith.constant 0 : i32
    %c0_i32_1 = arith.constant 0 : i32
    return %c0_i32, %c0_i32_0 : i32, i32
  }
  func.func @transform_8(%arg0: i32) -> (i32, i32) {
    %c0_i32 = arith.constant 0 : i32
    %c0_i32_0 = arith.constant 0 : i32
    %c0_i32_1 = arith.constant 0 : i32
    return %c0_i32, %c0_i32_0 : i32, i32
  }
  func.func @transform_9(%arg0: i32) -> (i32, i32) {
    %c0_i32 = arith.constant 0 : i32
    %c0_i32_0 = arith.constant 0 : i32
    %c0_i32_1 = arith.constant 0 : i32
    return %c0_i32, %c0_i32_0 : i32, i32
  }
  func.func @transform_10(%arg0: i32) -> (i32, i32) {
    %c0_i32 = arith.constant 0 : i32
    %c0_i32_0 = arith.constant 0 : i32
    %c0_i32_1 = arith.constant 0 : i32
    return %c0_i32, %c0_i32_0 : i32, i32
  }
  func.func @transform_11(%arg0: i32) -> (i32, i32) {
    %c0_i32 = arith.constant 0 : i32
    %c0_i32_0 = arith.constant 0 : i32
    return %c0_i32, %arg0 : i32, i32
  }
}

</mosaic_0001>

<llo_original>
// kernel: kaoshung_features7_nn.1
$region0: #{kaoshung_features7_nn.1}
  #allocation0 [shape = 'u32[]', space=smem, size = 0x4, offset = 0x4, fixed_abs, tag = 'smem constant byte address 0x4 - core index']
  #allocation1 [shape = 'u32[72,128]{1,0:T(1,128)}', space=vmem, size = 0x9000, scoped, tag = 'internal scratch']
  #allocation2 [shape = 'f32[1,1]{1,0:T(1,128)S(1)}', space=vmem, size = 0x200, scoped, tag = 'scoped memory for kaoshung_features7_nn.1']
  %s0 = inlined_call_operand.vmem [shape: f32[1000,7], index: 0, kind: input, shape index: {}]
  %s1 = inlined_call_operand.vmem [shape: f32[24,7], index: 1, kind: input, shape index: {}]
  %s2 = inlined_call_operand.vmem [shape: f32[24,1], index: 2, kind: input, shape index: {}]
  %s3 = inlined_call_operand.vmem [shape: f32[48,24], index: 3, kind: input, shape index: {}]
  %s4 = inlined_call_operand.vmem [shape: f32[48,1], index: 4, kind: input, shape index: {}]
  %s5 = inlined_call_operand.vmem [shape: f32[24,48], index: 5, kind: input, shape index: {}]
  %s6 = inlined_call_operand.vmem [shape: f32[24,1], index: 6, kind: input, shape index: {}]
  %s7 = inlined_call_operand.vmem [shape: f32[24,24], index: 7, kind: input, shape index: {}]
  %s8 = inlined_call_operand.vmem [shape: f32[24,1], index: 8, kind: input, shape index: {}]
  %s9 = inlined_call_operand.vmem [shape: f32[1,24], index: 9, kind: input, shape index: {}]
  %s10 = inlined_call_operand.<no memory space> [shape: f32[1,1], index: 10, kind: input, shape index: {}]
  %s11 = inlined_call_operand.hbm [shape: f32[1,1000], index: 11, kind: output, shape index: {}]
  %s12 = sld [smem:[#allocation0]]
  $region77: #{kaoshung_features7_nn.1} parent=0
    _
  %s14 = ssub.s32 1, %s12
  %s15 = scalar_select 0, %s14, %s12
  %v16 = vstv %s10
  %17 = vst [vmem:[#allocation2] sm:$0x1] %v16
  $region1: #{kaoshung_features7_nn.1} parent=0
    #allocation3 [shape = 'u8[4096]{0}', space=vmem, size = 0x1000, scoped, tag = 'output window, operand 0']
    #allocation4 [shape = 's32[2]{0}', space=sflag, size = 0x8, scoped, tag = 'scoped memory for kaoshung_features7_nn.1']
    %18 = vsyncpa [#allocation4], 0
    %s19 = scalar_lea.sflag [#allocation4], 1
    %20 = vsyncpa %s19, 0
    loop: start=0, step=1, limit=4
    $region2: #{kaoshung_features7_nn.1} parent=1 // loop_pre_header
      _
    $region3: #{kaoshung_features7_nn.1} parent=1 // loop_header
      %s22 = sphi 0, %s26
      %p23 = scmp.ge.s32.totalorder %s22, 4
      %s32 = sphi 0, %s34
      %s35 = sphi 0, %s32
      %s36 = sphi 0, %s35
      %s52 = sphi 0, %s36
      %s56 = sphi 0, %s56
      %s58 = sphi 0, %s56
      %s59 = sphi 0, %s58
      %s73 = sphi 0, %s59
      %s77 = sphi 0, %s77
      %s79 = sphi 0, %s77
      %s80 = sphi 0, %s79
      %s94 = sphi 0, %s80
      %s98 = sphi 0, %s98
      %s100 = sphi 0, %s98
      %s101 = sphi 0, %s100
      %s115 = sphi 0, %s101
      %s119 = sphi 0, %s119
      %s121 = sphi 0, %s119
      %s122 = sphi 0, %s121
      %s136 = sphi 0, %s122
      %s140 = sphi 0, %s140
      %s142 = sphi 0, %s140
      %s143 = sphi 0, %s142
      %s157 = sphi 0, %s143
      %s161 = sphi 0, %s161
      %s163 = sphi 0, %s161
      %s164 = sphi 0, %s163
      %s178 = sphi 0, %s164
      %s182 = sphi 0, %s182
      %s184 = sphi 0, %s182
      %s185 = sphi 0, %s184
      %s199 = sphi 0, %s185
      %s203 = sphi 0, %s203
      %s205 = sphi 0, %s203
      %s206 = sphi 0, %s205
      %s220 = sphi 0, %s206
      %s224 = sphi 0, %s224
      %s226 = sphi 0, %s224
      %s227 = sphi 0, %s226
      %s241 = sphi 0, %s227
      %s245 = sphi 0, %s245
      %s247 = sphi 0, %s245
      %s248 = sphi 0, %s247
      %s262 = sphi 0, %s248
      %s268 = sphi 0, %s270
      %s271 = sphi 0, %s268
      %s272 = sphi 0, %s271
      %s288 = sphi 0, %s272
    $region4: #{kaoshung_features7_nn.1} parent=1 // loop_header_branch
      %25 = sbr.rel (%p23) target = $region8
    $region5: #{kaoshung_features7_nn.1} parent=1 // loop_body
      %s27 = ssub.s32 %s22, 1
      %s28 = ssub.s32 %s22, 2
      %s29 = sadd.s32 %s22, 1
      %s30 = ssub.s32 %s22, %s29
      %p31 = scmp.eq.s32.totalorder %s30, 0
      %s33 = sadd.s32 %s32, 1
      %s34 = scalar_select %p31, %s32, %s33
      %p37 = pneg %p31
      %p38 = scmp.eq.s32.totalorder %s22, 1
      %p39 = por %p37, %p38
      %p40 = scmp.ne.s32.totalorder %s32, %s35
      %p41 = scmp.eq.s32.totalorder %s22, 0
      %p42 = por %p40, %p41
      %p43 = scmp.ne.s32.totalorder %s32, %s35
      %p44 = scmp.eq.s32.totalorder %s27, 1
      %p45 = por %p43, %p44
      %p46 = scmp.ne.s32.totalorder %s35, %s36
      %p47 = scmp.eq.s32.totalorder %s27, 0
      %p48 = por %p46, %p47
      %p49 = scmp.ne.s32.totalorder %s35, %s36
      %p50 = scmp.eq.s32.totalorder %s28, 1
      %p51 = por %p49, %p50
      %p53 = scmp.ne.s32.totalorder %s36, %s52
      %p54 = scmp.eq.s32.totalorder %s28, 0
      %p55 = por %p53, %p54
      %s57 = sadd.s32 %s56, 1
      %p60 = scmp.eq.s32.totalorder %s22, 1
      %p61 = scmp.ne.s32.totalorder %s56, %s58
      %p62 = scmp.eq.s32.totalorder %s22, 0
      %p63 = por %p61, %p62
      %p64 = scmp.ne.s32.totalorder %s56, %s58
      %p65 = scmp.eq.s32.totalorder %s27, 1
      %p66 = por %p64, %p65
      %p67 = scmp.ne.s32.totalorder %s58, %s59
      %p68 = scmp.eq.s32.totalorder %s27, 0
      %p69 = por %p67, %p68
      %p70 = scmp.ne.s32.totalorder %s58, %s59
      %p71 = scmp.eq.s32.totalorder %s28, 1
      %p72 = por %p70, %p71
      %p74 = scmp.ne.s32.totalorder %s59, %s73
      %p75 = scmp.eq.s32.totalorder %s28, 0
      %p76 = por %p74, %p75
      %s78 = sadd.s32 %s77, 1
      %p81 = scmp.eq.s32.totalorder %s22, 1
      %p82 = scmp.ne.s32.totalorder %s77, %s79
      %p83 = scmp.eq.s32.totalorder %s22, 0
      %p84 = por %p82, %p83
      %p85 = scmp.ne.s32.totalorder %s77, %s79
      %p86 = scmp.eq.s32.totalorder %s27, 1
      %p87 = por %p85, %p86
      %p88 = scmp.ne.s32.totalorder %s79, %s80
      %p89 = scmp.eq.s32.totalorder %s27, 0
      %p90 = por %p88, %p89
      %p91 = scmp.ne.s32.totalorder %s79, %s80
      %p92 = scmp.eq.s32.totalorder %s28, 1
      %p93 = por %p91, %p92
      %p95 = scmp.ne.s32.totalorder %s80, %s94
      %p96 = scmp.eq.s32.totalorder %s28, 0
      %p97 = por %p95, %p96
      %s99 = sadd.s32 %s98, 1
      %p102 = scmp.eq.s32.totalorder %s22, 1
      %p103 = scmp.ne.s32.totalorder %s98, %s100
      %p104 = scmp.eq.s32.totalorder %s22, 0
      %p105 = por %p103, %p104
      %p106 = scmp.ne.s32.totalorder %s98, %s100
      %p107 = scmp.eq.s32.totalorder %s27, 1
      %p108 = por %p106, %p107
      %p109 = scmp.ne.s32.totalorder %s100, %s101
      %p110 = scmp.eq.s32.totalorder %s27, 0
      %p111 = por %p109, %p110
      %p112 = scmp.ne.s32.totalorder %s100, %s101
      %p113 = scmp.eq.s32.totalorder %s28, 1
      %p114 = por %p112, %p113
      %p116 = scmp.ne.s32.totalorder %s101, %s115
      %p117 = scmp.eq.s32.totalorder %s28, 0
      %p118 = por %p116, %p117
      %s120 = sadd.s32 %s119, 1
      %p123 = scmp.eq.s32.totalorder %s22, 1
      %p124 = scmp.ne.s32.totalorder %s119, %s121
      %p125 = scmp.eq.s32.totalorder %s22, 0
      %p126 = por %p124, %p125
      %p127 = scmp.ne.s32.totalorder %s119, %s121
      %p128 = scmp.eq.s32.totalorder %s27, 1
      %p129 = por %p127, %p128
      %p130 = scmp.ne.s32.totalorder %s121, %s122
      %p131 = scmp.eq.s32.totalorder %s27, 0
      %p132 = por %p130, %p131
      %p133 = scmp.ne.s32.totalorder %s121, %s122
      %p134 = scmp.eq.s32.totalorder %s28, 1
      %p135 = por %p133, %p134
      %p137 = scmp.ne.s32.totalorder %s122, %s136
      %p138 = scmp.eq.s32.totalorder %s28, 0
      %p139 = por %p137, %p138
      %s141 = sadd.s32 %s140, 1
      %p144 = scmp.eq.s32.totalorder %s22, 1
      %p145 = scmp.ne.s32.totalorder %s140, %s142
      %p146 = scmp.eq.s32.totalorder %s22, 0
      %p147 = por %p145, %p146
      %p148 = scmp.ne.s32.totalorder %s140, %s142
      %p149 = scmp.eq.s32.totalorder %s27, 1
      %p150 = por %p148, %p149
      %p151 = scmp.ne.s32.totalorder %s142, %s143
      %p152 = scmp.eq.s32.totalorder %s27, 0
      %p153 = por %p151, %p152
      %p154 = scmp.ne.s32.totalorder %s142, %s143
      %p155 = scmp.eq.s32.totalorder %s28, 1
      %p156 = por %p154, %p155
      %p158 = scmp.ne.s32.totalorder %s143, %s157
      %p159 = scmp.eq.s32.totalorder %s28, 0
      %p160 = por %p158, %p159
      %s162 = sadd.s32 %s161, 1
      %p165 = scmp.eq.s32.totalorder %s22, 1
      %p166 = scmp.ne.s32.totalorder %s161, %s163
      %p167 = scmp.eq.s32.totalorder %s22, 0
      %p168 = por %p166, %p167
      %p169 = scmp.ne.s32.totalorder %s161, %s163
      %p170 = scmp.eq.s32.totalorder %s27, 1
      %p171 = por %p169, %p170
      %p172 = scmp.ne.s32.totalorder %s163, %s164
      %p173 = scmp.eq.s32.totalorder %s27, 0
      %p174 = por %p172, %p173
      %p175 = scmp.ne.s32.totalorder %s163, %s164
      %p176 = scmp.eq.s32.totalorder %s28, 1
      %p177 = por %p175, %p176
      %p179 = scmp.ne.s32.totalorder %s164, %s178
      %p180 = scmp.eq.s32.totalorder %s28, 0
      %p181 = por %p179, %p180
      %s183 = sadd.s32 %s182, 1
      %p186 = scmp.eq.s32.totalorder %s22, 1
      %p187 = scmp.ne.s32.totalorder %s182, %s184
      %p188 = scmp.eq.s32.totalorder %s22, 0
      %p189 = por %p187, %p188
      %p190 = scmp.ne.s32.totalorder %s182, %s184
      %p191 = scmp.eq.s32.totalorder %s27, 1
      %p192 = por %p190, %p191
      %p193 = scmp.ne.s32.totalorder %s184, %s185
      %p194 = scmp.eq.s32.totalorder %s27, 0
      %p195 = por %p193, %p194
      %p196 = scmp.ne.s32.totalorder %s184, %s185
      %p197 = scmp.eq.s32.totalorder %s28, 1
      %p198 = por %p196, %p197
      %p200 = scmp.ne.s32.totalorder %s185, %s199
      %p201 = scmp.eq.s32.totalorder %s28, 0
      %p202 = por %p200, %p201
      %s204 = sadd.s32 %s203, 1
      %p207 = scmp.eq.s32.totalorder %s22, 1
      %p208 = scmp.ne.s32.totalorder %s203, %s205
      %p209 = scmp.eq.s32.totalorder %s22, 0
      %p210 = por %p208, %p209
      %p211 = scmp.ne.s32.totalorder %s203, %s205
      %p212 = scmp.eq.s32.totalorder %s27, 1
      %p213 = por %p211, %p212
      %p214 = scmp.ne.s32.totalorder %s205, %s206
      %p215 = scmp.eq.s32.totalorder %s27, 0
      %p216 = por %p214, %p215
      %p217 = scmp.ne.s32.totalorder %s205, %s206
      %p218 = scmp.eq.s32.totalorder %s28, 1
      %p219 = por %p217, %p218
      %p221 = scmp.ne.s32.totalorder %s206, %s220
      %p222 = scmp.eq.s32.totalorder %s28, 0
      %p223 = por %p221, %p222
      %s225 = sadd.s32 %s224, 1
      %p228 = scmp.eq.s32.totalorder %s22, 1
      %p229 = scmp.ne.s32.totalorder %s224, %s226
      %p230 = scmp.eq.s32.totalorder %s22, 0
      %p231 = por %p229, %p230
      %p232 = scmp.ne.s32.totalorder %s224, %s226
      %p233 = scmp.eq.s32.totalorder %s27, 1
      %p234 = por %p232, %p233
      %p235 = scmp.ne.s32.totalorder %s226, %s227
      %p236 = scmp.eq.s32.totalorder %s27, 0
      %p237 = por %p235, %p236
      %p238 = scmp.ne.s32.totalorder %s226, %s227
      %p239 = scmp.eq.s32.totalorder %s28, 1
      %p240 = por %p238, %p239
      %p242 = scmp.ne.s32.totalorder %s227, %s241
      %p243 = scmp.eq.s32.totalorder %s28, 0
      %p244 = por %p242, %p243
      %s246 = sadd.s32 %s245, 1
      %p249 = scmp.eq.s32.totalorder %s22, 1
      %p250 = scmp.ne.s32.totalorder %s245, %s247
      %p251 = scmp.eq.s32.totalorder %s22, 0
      %p252 = por %p250, %p251
      %p253 = scmp.ne.s32.totalorder %s245, %s247
      %p254 = scmp.eq.s32.totalorder %s27, 1
      %p255 = por %p253, %p254
      %p256 = scmp.ne.s32.totalorder %s247, %s248
      %p257 = scmp.eq.s32.totalorder %s27, 0
      %p258 = por %p256, %p257
      %p259 = scmp.ne.s32.totalorder %s247, %s248
      %p260 = scmp.eq.s32.totalorder %s28, 1
      %p261 = por %p259, %p260
      %p263 = scmp.ne.s32.totalorder %s248, %s262
      %p264 = scmp.eq.s32.totalorder %s28, 0
      %p265 = por %p263, %p264
      %s266 = ssub.s32 %s22, %s29
      %p267 = scmp.eq.s32.totalorder %s266, 0
      %s269 = sadd.s32 %s268, 1
      %s270 = scalar_select %p267, %s268, %s269
      %p273 = pneg %p267
      %p274 = scmp.eq.s32.totalorder %s22, 1
      %p275 = por %p273, %p274
      %p276 = scmp.ne.s32.totalorder %s268, %s271
      %p277 = scmp.eq.s32.totalorder %s22, 0
      %p278 = por %p276, %p277
      %p279 = scmp.ne.s32.totalorder %s268, %s271
      %p280 = scmp.eq.s32.totalorder %s27, 1
      %p281 = por %p279, %p280
      %p282 = scmp.ne.s32.totalorder %s271, %s272
      %p283 = scmp.eq.s32.totalorder %s27, 0
      %p284 = por %p282, %p283
      %p285 = scmp.ne.s32.totalorder %s271, %s272
      %p286 = scmp.eq.s32.totalorder %s28, 1
      %p287 = por %p285, %p286
      %p289 = scmp.ne.s32.totalorder %s272, %s288
      %p290 = scmp.eq.s32.totalorder %s28, 0
      %p291 = por %p289, %p290
      %p292 = scmp.le.s32.totalorder 1, %s22
      %p293 = scmp.lt.s32.totalorder %s22, 3
      %p294 = pnand %p292, %p293
      %p295 = pneg %p294
      // Predicated region
      $region9: #{kaoshung_features7_nn.1} parent=5 // pred_check
        _
      $region10: #{kaoshung_features7_nn.1} parent=5 // pred_check_branch
        %297 = sbr.rel (%p294) target = $region12
      $region11: #{kaoshung_features7_nn.1} parent=5 // pred_region
        %s298 = ssub.s32 %s22, 1
        // Predicated region
        $region13: #{kaoshung_features7_nn.1} parent=11 // pred_check
          %p299 = pneg %p69
        $region14: #{kaoshung_features7_nn.1} parent=11 // pred_check_branch
          %301 = sbr.rel (%p299) target = $region16
        $region15: #{kaoshung_features7_nn.1} parent=11 // pred_region
          _
        $region16: #{kaoshung_features7_nn.1} parent=11 // pred_fallthru
          _
        // Predicated region
        $region17: #{kaoshung_features7_nn.1} parent=11 // pred_check
          %p302 = pneg %p90
        $region18: #{kaoshung_features7_nn.1} parent=11 // pred_check_branch
          %304 = sbr.rel (%p302) target = $region20
        $region19: #{kaoshung_features7_nn.1} parent=11 // pred_region
          _
        $region20: #{kaoshung_features7_nn.1} parent=11 // pred_fallthru
          _
        // Predicated region
        $region21: #{kaoshung_features7_nn.1} parent=11 // pred_check
          %p305 = pneg %p111
        $region22: #{kaoshung_features7_nn.1} parent=11 // pred_check_branch
          %307 = sbr.rel (%p305) target = $region24
        $region23: #{kaoshung_features7_nn.1} parent=11 // pred_region
          _
        $region24: #{kaoshung_features7_nn.1} parent=11 // pred_fallthru
          _
        // Predicated region
        $region25: #{kaoshung_features7_nn.1} parent=11 // pred_check
          %p308 = pneg %p132
        $region26: #{kaoshung_features7_nn.1} parent=11 // pred_check_branch
          %310 = sbr.rel (%p308) target = $region28
        $region27: #{kaoshung_features7_nn.1} parent=11 // pred_region
          _
        $region28: #{kaoshung_features7_nn.1} parent=11 // pred_fallthru
          _
        // Predicated region
        $region29: #{kaoshung_features7_nn.1} parent=11 // pred_check
          %p311 = pneg %p153
        $region30: #{kaoshung_features7_nn.1} parent=11 // pred_check_branch
          %313 = sbr.rel (%p311) target = $region32
        $region31: #{kaoshung_features7_nn.1} parent=11 // pred_region
          _
        $region32: #{kaoshung_features7_nn.1} parent=11 // pred_fallthru
          _
        // Predicated region
        $region33: #{kaoshung_features7_nn.1} parent=11 // pred_check
          %p314 = pneg %p174
        $region34: #{kaoshung_features7_nn.1} parent=11 // pred_check_branch
          %316 = sbr.rel (%p314) target = $region36
        $region35: #{kaoshung_features7_nn.1} parent=11 // pred_region
          _
        $region36: #{kaoshung_features7_nn.1} parent=11 // pred_fallthru
          _
        // Predicated region
        $region37: #{kaoshung_features7_nn.1} parent=11 // pred_check
          %p317 = pneg %p195
        $region38: #{kaoshung_features7_nn.1} parent=11 // pred_check_branch
          %319 = sbr.rel (%p317) target = $region40
        $region39: #{kaoshung_features7_nn.1} parent=11 // pred_region
          _
        $region40: #{kaoshung_features7_nn.1} parent=11 // pred_fallthru
          _
        // Predicated region
        $region41: #{kaoshung_features7_nn.1} parent=11 // pred_check
          %p320 = pneg %p216
        $region42: #{kaoshung_features7_nn.1} parent=11 // pred_check_branch
          %322 = sbr.rel (%p320) target = $region44
        $region43: #{kaoshung_features7_nn.1} parent=11 // pred_region
          _
        $region44: #{kaoshung_features7_nn.1} parent=11 // pred_fallthru
          _
        // Predicated region
        $region45: #{kaoshung_features7_nn.1} parent=11 // pred_check
          %p323 = pneg %p237
        $region46: #{kaoshung_features7_nn.1} parent=11 // pred_check_branch
          %325 = sbr.rel (%p323) target = $region48
        $region47: #{kaoshung_features7_nn.1} parent=11 // pred_region
          _
        $region48: #{kaoshung_features7_nn.1} parent=11 // pred_fallthru
          _
        // Predicated region
        $region49: #{kaoshung_features7_nn.1} parent=11 // pred_check
          %p326 = pneg %p258
        $region50: #{kaoshung_features7_nn.1} parent=11 // pred_check_branch
          %328 = sbr.rel (%p326) target = $region52
        $region51: #{kaoshung_features7_nn.1} parent=11 // pred_region
          _
        $region52: #{kaoshung_features7_nn.1} parent=11 // pred_fallthru
          _
      $region12: #{kaoshung_features7_nn.1} parent=5 // pred_fallthru
        _
      %p329 = scmp.lt.s32.totalorder %s22, 2
      // Predicated region
      $region53: #{kaoshung_features7_nn.1} parent=5 // pred_check
        %p330 = pneg %p329
      $region54: #{kaoshung_features7_nn.1} parent=5 // pred_check_branch
        %332 = sbr.rel (%p330) target = $region56
      $region55: #{kaoshung_features7_nn.1} parent=5 // pred_region
        // Predicated region
        $region57: #{kaoshung_features7_nn.1} parent=55 // pred_check
          %p333 = pneg %p42
        $region58: #{kaoshung_features7_nn.1} parent=55 // pred_check_branch
          %335 = sbr.rel (%p333) target = $region60
        $region59: #{kaoshung_features7_nn.1} parent=55 // pred_region
          %s336 = smul.u32 64, %s22
          %s337 = ssub.s32 125, %s336
          %p338 = scmp.lt.s32.totalorder %s337, 64
          %s339 = scalar_select %p338, %s337, 64
          %s340 = smul.u32 8, %s339
          %p341 = scmp.lt.s32.totalorder %s336, 124
          %s342 = scalar_select %p341, %s336, 124
          %s343 = smul.addr %s342, 8
          %s344 = scalar_lea.vmem %s0, %s343
          %s345 = smul.u32 64, %s22
          %s346 = ssub.s32 125, %s345
          %p347 = scmp.lt.s32.totalorder %s346, 64
          %s348 = scalar_select %p347, %s346, 64
          %s349 = smul.u32 8, %s348
        $region60: #{kaoshung_features7_nn.1} parent=55 // pred_fallthru
          _
      $region56: #{kaoshung_features7_nn.1} parent=5 // pred_fallthru
        _
      %p350 = scmp.le.s32.totalorder 1, %s22
      %p351 = scmp.lt.s32.totalorder %s22, 3
      %p352 = pnand %p350, %p351
      %p353 = pneg %p352
      // Predicated region
      $region61: #{kaoshung_features7_nn.1} parent=5 // pred_check
        _
      $region62: #{kaoshung_features7_nn.1} parent=5 // pred_check_branch
        %355 = sbr.rel (%p352) target = $region64
      $region63: #{kaoshung_features7_nn.1} parent=5 // pred_region
        %s356 = ssub.s32 %s22, 1
        %s357 = smul.u32 64, %s27
        %s358 = ssub.s32 125, %s357
        %p359 = scmp.lt.s32.totalorder %s358, 64
        %s360 = scalar_select %p359, %s358, 64
        %s361 = smul.u32 8, %s360
        %p362 = scmp.lt.s32.totalorder %s357, 124
        %s363 = scalar_select %p362, %s357, 124
        %s364 = smul.addr %s363, 8
        %s365 = scalar_lea.vmem %s0, %s364
        %p366 = pneg %p48
        %p367 = pneg %p45
        %p368 = pneg %p69
        %p369 = pneg %p66
        %p370 = pneg %p90
        %p371 = pneg %p87
        %p372 = pneg %p111
        %p373 = pneg %p108
        %p374 = pneg %p132
        %p375 = pneg %p129
        %p376 = pneg %p153
        %p377 = pneg %p150
        %p378 = pneg %p174
        %p379 = pneg %p171
        %p380 = pneg %p195
        %p381 = pneg %p192
        %p382 = pneg %p216
        %p383 = pneg %p213
        %p384 = pneg %p237
        %p385 = pneg %p234
        %p386 = pneg %p258
        %p387 = pneg %p255
        %p388 = pneg %p284
        %p389 = pneg %p281
        %s390 = sand.u32 %s271, 1
        %s391 = scalar_lea.sflag [#allocation4], %s390
        %s392 = sand.u32 %s271, 1
        %s393 = smul.addr %s392, 4
        %s394 = scalar_lea.vmem [#allocation3], %s393
        %s395 = smul.u32 64, %s27
        %s396 = ssub.s32 125, %s395
        %p397 = scmp.lt.s32.totalorder %s396, 64
        %s398 = scalar_select %p397, %s396, 64
        %s399 = smul.u32 8, %s398
        %p400 = scmp.lt.s32.totalorder %s395, 124
        %s401 = scalar_select %p400, %s395, 124
        %s402 = smul.addr %s401, 8
        %s403 = scalar_lea.vmem %s0, %s402
        %s404 = smul.u32 64, %s27
        %s405 = ssub.s32 125, %s404
        %p406 = scmp.lt.s32.totalorder %s405, 64
        %s407 = scalar_select %p406, %s405, 64
        %s408 = smul.u32 8, %s407
        %s409 = smul.u32 4, %s27
        %v410 = vld [vmem:[%s1] sm:$0xff]
        %v411 = vld [vmem:[%s1 + $0x8] sm:$0xff]
        %v412 = vld [vmem:[%s1 + $0x10] sm:$0xff]
        %v413 = vld [vmem:[%s403] sm:$0xff]
        %v414 = vld [vmem:[%s403 + $0x8] sm:$0xff]
        %v415 = vld [vmem:[%s403 + $0x10] sm:$0xff]
        %v416 = vld [vmem:[%s403 + $0x18] sm:$0xff]
        %v417 = vld [vmem:[%s403 + $0x20] sm:$0xff]
        %v418 = vld [vmem:[%s403 + $0x28] sm:$0xff]
        %v419 = vld [vmem:[%s403 + $0x30] sm:$0xff]
        %v420 = vld [vmem:[%s403 + $0x38] sm:$0xff]
        %v421 = vld [vmem:[%s403 + $0x40] sm:$0xff]
        %v422 = vld [vmem:[%s403 + $0x48] sm:$0xff]
        %v423 = vld [vmem:[%s403 + $0x50] sm:$0xff]
        %v424 = vld [vmem:[%s403 + $0x58] sm:$0xff]
        %v425 = vld [vmem:[%s403 + $0x60] sm:$0xff]
        %v426 = vld [vmem:[%s403 + $0x68] sm:$0xff]
        %v427 = vld [vmem:[%s403 + $0x70] sm:$0xff]
        %v428 = vld [vmem:[%s403 + $0x78] sm:$0xff]
        %v429 = vld [vmem:[%s403 + $0x80] sm:$0xff]
        %v430 = vld [vmem:[%s403 + $0x88] sm:$0xff]
        %v431 = vld [vmem:[%s403 + $0x90] sm:$0xff]
        %v432 = vld [vmem:[%s403 + $0x98] sm:$0xff]
        %v433 = vld [vmem:[%s403 + $0xa0] sm:$0xff]
        %v434 = vld [vmem:[%s403 + $0xa8] sm:$0xff]
        %v435 = vld [vmem:[%s403 + $0xb0] sm:$0xff]
        %v436 = vld [vmem:[%s403 + $0xb8] sm:$0xff]
        %v437 = vld [vmem:[%s403 + $0xc0] sm:$0xff]
        %v438 = vld [vmem:[%s403 + $0xc8] sm:$0xff]
        %v439 = vld [vmem:[%s403 + $0xd0] sm:$0xff]
        %v440 = vld [vmem:[%s403 + $0xd8] sm:$0xff]
        %v441 = vld [vmem:[%s403 + $0xe0] sm:$0xff]
        %v442 = vld [vmem:[%s403 + $0xe8] sm:$0xff]
        %v443 = vld [vmem:[%s403 + $0xf0] sm:$0xff]
        %v444 = vld [vmem:[%s403 + $0xf8] sm:$0xff]
        %v445 = vld [vmem:[%s403 + $0x100] sm:$0xff]
        %v446 = vld [vmem:[%s403 + $0x108] sm:$0xff]
        %v447 = vld [vmem:[%s403 + $0x110] sm:$0xff]
        %v448 = vld [vmem:[%s403 + $0x118] sm:$0xff]
        %v449 = vld [vmem:[%s403 + $0x120] sm:$0xff]
        %v450 = vld [vmem:[%s403 + $0x128] sm:$0xff]
        %v451 = vld [vmem:[%s403 + $0x130] sm:$0xff]
        %v452 = vld [vmem:[%s403 + $0x138] sm:$0xff]
        %v453 = vld [vmem:[%s403 + $0x140] sm:$0xff]
        %v454 = vld [vmem:[%s403 + $0x148] sm:$0xff]
        %v455 = vld [vmem:[%s403 + $0x150] sm:$0xff]
        %v456 = vld [vmem:[%s403 + $0x158] sm:$0xff]
        %v457 = vld [vmem:[%s403 + $0x160] sm:$0xff]
        %v458 = vld [vmem:[%s403 + $0x168] sm:$0xff]
        %v459 = vld [vmem:[%s403 + $0x170] sm:$0xff]
        %v460 = vld [vmem:[%s403 + $0x178] sm:$0xff]
        %v461 = vld [vmem:[%s403 + $0x180] sm:$0xff]
        %v462 = vld [vmem:[%s403 + $0x188] sm:$0xff]
        %v463 = vld [vmem:[%s403 + $0x190] sm:$0xff]
        %v464 = vld [vmem:[%s403 + $0x198] sm:$0xff]
        %v465 = vld [vmem:[%s403 + $0x1a0] sm:$0xff]
        %v466 = vld [vmem:[%s403 + $0x1a8] sm:$0xff]
        %v467 = vld [vmem:[%s403 + $0x1b0] sm:$0xff]
        %v468 = vld [vmem:[%s403 + $0x1b8] sm:$0xff]
        %v469 = vld [vmem:[%s403 + $0x1c0] sm:$0xff]
        %v470 = vld [vmem:[%s403 + $0x1c8] sm:$0xff]
        %v471 = vld [vmem:[%s403 + $0x1d0] sm:$0xff]
        %v472 = vld [vmem:[%s403 + $0x1d8] sm:$0xff]
        %v473 = vld [vmem:[%s403 + $0x1e0] sm:$0xff]
        %v474 = vld [vmem:[%s403 + $0x1e8] sm:$0xff]
        %v475 = vld [vmem:[%s403 + $0x1f0] sm:$0xff]
        %v476 = vld [vmem:[%s403 + $0x1f8] sm:$0xff]
        %v477 = vld [vmem:[%s2] sm:$0xff]
        %v478 = vld [vmem:[%s2 + $0x8] sm:$0xff]
        %v479 = vld [vmem:[%s2 + $0x10] sm:$0xff]
        %481 = vset.pattern.permute.xlu0 0
        %482 = vperm.xlu0 %481, %v477
        %v483 = vpop.permute.xlu0 %482
        %486 = vset.pattern.permute.xlu0 0
        %487 = vperm.xlu0 %486, %v478
        %v488 = vpop.permute.xlu0 %487
        %491 = vset.pattern.permute.xlu0 0
        %492 = vperm.xlu0 %491, %v479
        %v493 = vpop.permute.xlu0 %492
        %vm495 = vcmask 56320
        %v497 = vsel %vm495, %v410, 0
        %v500 = vsel %vm495, %v411, 0
        %v503 = vsel %vm495, %v412, 0
        %v506 = vsel %vm495, %v413, 0
        %v509 = vsel %vm495, %v414, 0
        %v512 = vsel %vm495, %v415, 0
        %v515 = vsel %vm495, %v416, 0
        %v518 = vsel %vm495, %v417, 0
        %v521 = vsel %vm495, %v418, 0
        %v524 = vsel %vm495, %v419, 0
        %v527 = vsel %vm495, %v420, 0
        %v530 = vsel %vm495, %v421, 0
        %v533 = vsel %vm495, %v422, 0
        %v536 = vsel %vm495, %v423, 0
        %v539 = vsel %vm495, %v424, 0
        %v542 = vsel %vm495, %v425, 0
        %v545 = vsel %vm495, %v426, 0
        %v548 = vsel %vm495, %v427, 0
        %v551 = vsel %vm495, %v428, 0
        %v554 = vsel %vm495, %v429, 0
        %v557 = vsel %vm495, %v430, 0
        %v560 = vsel %vm495, %v431, 0
        %v563 = vsel %vm495, %v432, 0
        %v566 = vsel %vm495, %v433, 0
        %v569 = vsel %vm495, %v434, 0
        %v572 = vsel %vm495, %v435, 0
        %v575 = vsel %vm495, %v436, 0
        %v578 = vsel %vm495, %v437, 0
        %v581 = vsel %vm495, %v438, 0
        %v584 = vsel %vm495, %v439, 0
        %v587 = vsel %vm495, %v440, 0
        %v590 = vsel %vm495, %v441, 0
        %v593 = vsel %vm495, %v442, 0
        %v596 = vsel %vm495, %v443, 0
        %v599 = vsel %vm495, %v444, 0
        %v602 = vsel %vm495, %v445, 0
        %v605 = vsel %vm495, %v446, 0
        %v608 = vsel %vm495, %v447, 0
        %v611 = vsel %vm495, %v448, 0
        %v614 = vsel %vm495, %v449, 0
        %v617 = vsel %vm495, %v450, 0
        %v620 = vsel %vm495, %v451, 0
        %v623 = vsel %vm495, %v452, 0
        %v626 = vsel %vm495, %v453, 0
        %v629 = vsel %vm495, %v454, 0
        %v632 = vsel %vm495, %v455, 0
        %v635 = vsel %vm495, %v456, 0
        %v638 = vsel %vm495, %v457, 0
        %v641 = vsel %vm495, %v458, 0
        %v644 = vsel %vm495, %v459, 0
        %v647 = vsel %vm495, %v460, 0
        %v650 = vsel %vm495, %v461, 0
        %v653 = vsel %vm495, %v462, 0
        %v656 = vsel %vm495, %v463, 0
        %v659 = vsel %vm495, %v464, 0
        %v662 = vsel %vm495, %v465, 0
        %v665 = vsel %vm495, %v466, 0
        %v668 = vsel %vm495, %v467, 0
        %v671 = vsel %vm495, %v468, 0
        %v674 = vsel %vm495, %v469, 0
        %v677 = vsel %vm495, %v470, 0
        %v680 = vsel %vm495, %v471, 0
        %v683 = vsel %vm495, %v472, 0
        %v686 = vsel %vm495, %v473, 0
        %v689 = vsel %vm495, %v474, 0
        %v692 = vsel %vm495, %v475, 0
        %v695 = vsel %vm495, %v476, 0
        %697 = vmatpush.xpose.msra.mxu0 %v551
        %698 = vmatpush.xpose.msra.mxu0 %v548
        %699 = vmatpush.xpose.msra.mxu0 %v545
        %700 = vmatpush.xpose.msra.mxu0 %v542
        %701 = vmatpush.xpose.msra.mxu0 %v539
        %702 = vmatpush.xpose.msra.mxu0 %v536
        %703 = vmatpush.xpose.msra.mxu0 %v533
        %704 = vmatpush.xpose.msra.mxu0 %v530
        %705 = vmatpush.xpose.msra.mxu0 %v527
        %706 = vmatpush.xpose.msra.mxu0 %v524
        %707 = vmatpush.xpose.msra.mxu0 %v521
        %708 = vmatpush.xpose.msra.mxu0 %v518
        %709 = vmatpush.xpose.msra.mxu0 %v515
        %710 = vmatpush.xpose.msra.mxu0 %v512
        %711 = vmatpush.xpose.msra.mxu0 %v509
        %712 = vmatpush.xpose.msra.mxu0 %v506
        %713 = vmatmul.f32.gmra.mxu0 %v497
        %v714 = vpop.f32.mrf.mxu0
        %v715 = vadd.f32 %v483, %v714
        %716 = vmatmul.f32.gmra.mxu0 %v500
        %v717 = vpop.f32.mrf.mxu0
        %v718 = vadd.f32 %v488, %v717
        %719 = vmatmul.f32.gmra.mxu0 %v503
        %v720 = vpop.f32.mrf.mxu0
        %v721 = vadd.f32 %v493, %v720
        %722 = vdwg.mxu0
        %723 = vmatpush.xpose.msra.mxu0 %v599
        %724 = vmatpush.xpose.msra.mxu0 %v596
        %725 = vmatpush.xpose.msra.mxu0 %v593
        %726 = vmatpush.xpose.msra.mxu0 %v590
        %727 = vmatpush.xpose.msra.mxu0 %v587
        %728 = vmatpush.xpose.msra.mxu0 %v584
        %729 = vmatpush.xpose.msra.mxu0 %v581
        %730 = vmatpush.xpose.msra.mxu0 %v578
        %731 = vmatpush.xpose.msra.mxu0 %v575
        %732 = vmatpush.xpose.msra.mxu0 %v572
        %733 = vmatpush.xpose.msra.mxu0 %v569
        %734 = vmatpush.xpose.msra.mxu0 %v566
        %735 = vmatpush.xpose.msra.mxu0 %v563
        %736 = vmatpush.xpose.msra.mxu0 %v560
        %737 = vmatpush.xpose.msra.mxu0 %v557
        %738 = vmatpush.xpose.msra.mxu0 %v554
        %739 = vmatmul.f32.gmra.mxu0 %v497
        %v740 = vpop.f32.mrf.mxu0
        %v741 = vadd.f32 %v483, %v740
        %742 = vmatmul.f32.gmra.mxu0 %v500
        %v743 = vpop.f32.mrf.mxu0
        %v744 = vadd.f32 %v488, %v743
        %745 = vmatmul.f32.gmra.mxu0 %v503
        %v746 = vpop.f32.mrf.mxu0
        %v747 = vadd.f32 %v493, %v746
        %748 = vdwg.mxu0
        %749 = vmatpush.xpose.msra.mxu0 %v647
        %750 = vmatpush.xpose.msra.mxu0 %v644
        %751 = vmatpush.xpose.msra.mxu0 %v641
        %752 = vmatpush.xpose.msra.mxu0 %v638
        %753 = vmatpush.xpose.msra.mxu0 %v635
        %754 = vmatpush.xpose.msra.mxu0 %v632
        %755 = vmatpush.xpose.msra.mxu0 %v629
        %756 = vmatpush.xpose.msra.mxu0 %v626
        %757 = vmatpush.xpose.msra.mxu0 %v623
        %758 = vmatpush.xpose.msra.mxu0 %v620
        %759 = vmatpush.xpose.msra.mxu0 %v617
        %760 = vmatpush.xpose.msra.mxu0 %v614
        %761 = vmatpush.xpose.msra.mxu0 %v611
        %762 = vmatpush.xpose.msra.mxu0 %v608
        %763 = vmatpush.xpose.msra.mxu0 %v605
        %764 = vmatpush.xpose.msra.mxu0 %v602
        %765 = vmatmul.f32.gmra.mxu0 %v497
        %v766 = vpop.f32.mrf.mxu0
        %v767 = vadd.f32 %v483, %v766
        %768 = vmatmul.f32.gmra.mxu0 %v500
        %v769 = vpop.f32.mrf.mxu0
        %v770 = vadd.f32 %v488, %v769
        %771 = vmatmul.f32.gmra.mxu0 %v503
        %v772 = vpop.f32.mrf.mxu0
        %v773 = vadd.f32 %v493, %v772
        %774 = vdwg.mxu0
        %775 = vmatpush.xpose.msra.mxu0 %v695
        %776 = vmatpush.xpose.msra.mxu0 %v692
        %777 = vmatpush.xpose.msra.mxu0 %v689
        %778 = vmatpush.xpose.msra.mxu0 %v686
        %779 = vmatpush.xpose.msra.mxu0 %v683
        %780 = vmatpush.xpose.msra.mxu0 %v680
        %781 = vmatpush.xpose.msra.mxu0 %v677
        %782 = vmatpush.xpose.msra.mxu0 %v674
        %783 = vmatpush.xpose.msra.mxu0 %v671
        %784 = vmatpush.xpose.msra.mxu0 %v668
        %785 = vmatpush.xpose.msra.mxu0 %v665
        %786 = vmatpush.xpose.msra.mxu0 %v662
        %787 = vmatpush.xpose.msra.mxu0 %v659
        %788 = vmatpush.xpose.msra.mxu0 %v656
        %789 = vmatpush.xpose.msra.mxu0 %v653
        %790 = vmatpush.xpose.msra.mxu0 %v650
        %791 = vmatmul.f32.gmra.mxu0 %v497
        %v792 = vpop.f32.mrf.mxu0
        %v793 = vadd.f32 %v483, %v792
        %794 = vmatmul.f32.gmra.mxu0 %v500
        %v795 = vpop.f32.mrf.mxu0
        %v796 = vadd.f32 %v488, %v795
        %797 = vmatmul.f32.gmra.mxu0 %v503
        %v798 = vpop.f32.mrf.mxu0
        %v799 = vadd.f32 %v493, %v798
        %800 = vdwg.mxu0
        %v801 = vmin.f32 %v715, 20.0
        %v802 = vmin.f32 %v741, 20.0
        %v803 = vmin.f32 %v767, 20.0
        %v804 = vmin.f32 %v793, 20.0
        %v805 = vmin.f32 %v718, 20.0
        %v806 = vmin.f32 %v744, 20.0
        %v807 = vmin.f32 %v770, 20.0
        %v808 = vmin.f32 %v796, 20.0
        %v809 = vmin.f32 %v721, 20.0
        %v810 = vmin.f32 %v747, 20.0
        %v811 = vmin.f32 %v773, 20.0
        %v812 = vmin.f32 %v799, 20.0
        %v813 = vmul.f32 %v801, 1.442695
        %v814 = vpow.pop %v813
        %v815 = vmul.f32 %v802, 1.442695
        %v816 = vpow.pop %v815
        %v817 = vmul.f32 %v803, 1.442695
        %v818 = vpow.pop %v817
        %v819 = vmul.f32 %v804, 1.442695
        %v820 = vpow.pop %v819
        %v821 = vmul.f32 %v805, 1.442695
        %v822 = vpow.pop %v821
        %v823 = vmul.f32 %v806, 1.442695
        %v824 = vpow.pop %v823
        %v825 = vmul.f32 %v807, 1.442695
        %v826 = vpow.pop %v825
        %v827 = vmul.f32 %v808, 1.442695
        %v828 = vpow.pop %v827
        %v829 = vmul.f32 %v809, 1.442695
        %v830 = vpow.pop %v829
        %v831 = vmul.f32 %v810, 1.442695
        %v832 = vpow.pop %v831
        %v833 = vmul.f32 %v811, 1.442695
        %v834 = vpow.pop %v833
        %v835 = vmul.f32 %v812, 1.442695
        %v836 = vpow.pop %v835
        %v837 = vadd.f32 %v814, 2.0
        %v838 = vadd.f32 %v816, 2.0
        %v839 = vadd.f32 %v818, 2.0
        %v840 = vadd.f32 %v820, 2.0
        %v841 = vadd.f32 %v822, 2.0
        %v842 = vadd.f32 %v824, 2.0
        %v843 = vadd.f32 %v826, 2.0
        %v844 = vadd.f32 %v828, 2.0
        %v845 = vadd.f32 %v830, 2.0
        %v846 = vadd.f32 %v832, 2.0
        %v847 = vadd.f32 %v834, 2.0
        %v848 = vadd.f32 %v836, 2.0
        %v849 = vmul.f32 %v814, %v837
        %v850 = vmul.f32 %v816, %v838
        %v851 = vmul.f32 %v818, %v839
        %v852 = vmul.f32 %v820, %v840
        %v853 = vmul.f32 %v822, %v841
        %v854 = vmul.f32 %v824, %v842
        %v855 = vmul.f32 %v826, %v843
        %v856 = vmul.f32 %v828, %v844
        %v857 = vmul.f32 %v830, %v845
        %v858 = vmul.f32 %v832, %v846
        %v859 = vmul.f32 %v834, %v847
        %v860 = vmul.f32 %v836, %v848
        %v861 = vmul.f32 %v715, %v849
        %v862 = vmul.f32 %v741, %v850
        %v863 = vmul.f32 %v767, %v851
        %v864 = vmul.f32 %v793, %v852
        %v865 = vmul.f32 %v718, %v853
        %v866 = vmul.f32 %v744, %v854
        %v867 = vmul.f32 %v770, %v855
        %v868 = vmul.f32 %v796, %v856
        %v869 = vmul.f32 %v721, %v857
        %v870 = vmul.f32 %v747, %v858
        %v871 = vmul.f32 %v773, %v859
        %v872 = vmul.f32 %v799, %v860
        %v873 = vadd.f32 %v849, 2.0
        %v874 = vadd.f32 %v850, 2.0
        %v875 = vadd.f32 %v851, 2.0
        %v876 = vadd.f32 %v852, 2.0
        %v877 = vadd.f32 %v853, 2.0
        %v878 = vadd.f32 %v854, 2.0
        %v879 = vadd.f32 %v855, 2.0
        %v880 = vadd.f32 %v856, 2.0
        %v881 = vadd.f32 %v857, 2.0
        %v882 = vadd.f32 %v858, 2.0
        %v883 = vadd.f32 %v859, 2.0
        %v884 = vadd.f32 %v860, 2.0
        %v885 = vrcp.pop %v873
        %v886 = vrcp.pop %v874
        %v887 = vrcp.pop %v875
        %v888 = vrcp.pop %v876
        %v889 = vrcp.pop %v877
        %v890 = vrcp.pop %v878
        %v891 = vrcp.pop %v879
        %v892 = vrcp.pop %v880
        %v893 = vrcp.pop %v881
        %v894 = vrcp.pop %v882
        %v895 = vrcp.pop %v883
        %v896 = vrcp.pop %v884
        %v897 = vmul.f32 %v861, %v885
        %v898 = vmul.f32 %v862, %v886
        %v899 = vmul.f32 %v863, %v887
        %v900 = vmul.f32 %v864, %v888
        %v901 = vmul.f32 %v865, %v889
        %v902 = vmul.f32 %v866, %v890
        %v903 = vmul.f32 %v867, %v891
        %v904 = vmul.f32 %v868, %v892
        %v905 = vmul.f32 %v869, %v893
        %v906 = vmul.f32 %v870, %v894
        %v907 = vmul.f32 %v871, %v895
        %v908 = vmul.f32 %v872, %v896
        %vm909 = vcmp.gt.f32.partialorder %v715, 20.0
        %vm910 = vcmp.gt.f32.partialorder %v741, 20.0
        %vm911 = vcmp.gt.f32.partialorder %v767, 20.0
        %vm912 = vcmp.gt.f32.partialorder %v793, 20.0
        %vm913 = vcmp.gt.f32.partialorder %v718, 20.0
        %vm914 = vcmp.gt.f32.partialorder %v744, 20.0
        %vm915 = vcmp.gt.f32.partialorder %v770, 20.0
        %vm916 = vcmp.gt.f32.partialorder %v796, 20.0
        %vm917 = vcmp.gt.f32.partialorder %v721, 20.0
        %vm918 = vcmp.gt.f32.partialorder %v747, 20.0
        %vm919 = vcmp.gt.f32.partialorder %v773, 20.0
        %vm920 = vcmp.gt.f32.partialorder %v799, 20.0
        %v921 = vsel %vm909, %v715, %v897
        %v922 = vsel %vm910, %v741, %v898
        %v923 = vsel %vm911, %v767, %v899
        %v924 = vsel %vm912, %v793, %v900
        %v925 = vsel %vm913, %v718, %v901
        %v926 = vsel %vm914, %v744, %v902
        %v927 = vsel %vm915, %v770, %v903
        %v928 = vsel %vm916, %v796, %v904
        %v929 = vsel %vm917, %v721, %v905
        %v930 = vsel %vm918, %v747, %v906
        %v931 = vsel %vm919, %v773, %v907
        %v932 = vsel %vm920, %v799, %v908
        %v933 = vld [vmem:[%s3] sm:$0xff]
        %v934 = vld [vmem:[%s3 + $0x8] sm:$0xff]
        %v935 = vld [vmem:[%s3 + $0x10] sm:$0xff]
        %v936 = vld [vmem:[%s3 + $0x18] sm:$0xff]
        %v937 = vld [vmem:[%s3 + $0x20] sm:$0xff]
        %v938 = vld [vmem:[%s3 + $0x28] sm:$0xff]
        %v939 = vld [vmem:[%s4] sm:$0xff]
        %v940 = vld [vmem:[%s4 + $0x8] sm:$0xff]
        %v941 = vld [vmem:[%s4 + $0x10] sm:$0xff]
        %v942 = vld [vmem:[%s4 + $0x18] sm:$0xff]
        %v943 = vld [vmem:[%s4 + $0x20] sm:$0xff]
        %v944 = vld [vmem:[%s4 + $0x28] sm:$0xff]
        %946 = vset.pattern.permute.xlu0 0
        %947 = vperm.xlu0 %946, %v939
        %v948 = vpop.permute.xlu0 %947
        %951 = vset.pattern.permute.xlu0 0
        %952 = vperm.xlu0 %951, %v940
        %v953 = vpop.permute.xlu0 %952
        %956 = vset.pattern.permute.xlu0 0
        %957 = vperm.xlu0 %956, %v941
        %v958 = vpop.permute.xlu0 %957
        %961 = vset.pattern.permute.xlu0 0
        %962 = vperm.xlu0 %961, %v942
        %v963 = vpop.permute.xlu0 %962
        %966 = vset.pattern.permute.xlu0 0
        %967 = vperm.xlu0 %966, %v943
        %v968 = vpop.permute.xlu0 %967
        %971 = vset.pattern.permute.xlu0 0
        %972 = vperm.xlu0 %971, %v944
        %v973 = vpop.permute.xlu0 %972
        %vm975 = vcmask 195584
        %v977 = vsel %vm975, %v933, 0
        %v980 = vsel %vm975, %v934, 0
        %v983 = vsel %vm975, %v935, 0
        %v986 = vsel %vm975, %v936, 0
        %v989 = vsel %vm975, %v937, 0
        %v992 = vsel %vm975, %v938, 0
        %994 = vmatpush.msra.mxu0 0.0
        %995 = vmatpush.msra.mxu0 0.0
        %996 = vmatpush.msra.mxu0 0.0
        %997 = vmatpush.msra.mxu0 0.0
        %998 = vmatpush.msra.mxu0 0.0
        %999 = vmatpush.msra.mxu0 0.0
        %1000 = vmatpush.msra.mxu0 0.0
        %1001 = vmatpush.msra.mxu0 0.0
        %1002 = vmatpush.msra.mxu0 0.0
        %1003 = vmatpush.msra.mxu0 0.0
        %1004 = vmatpush.msra.mxu0 0.0
        %1005 = vmatpush.msra.mxu0 0.0
        %1006 = vmatpush.msra.mxu0 0.0
        %1007 = vmatpush.msra.mxu0 %v929
        %1008 = vmatpush.msra.mxu0 %v925
        %1009 = vmatpush.msra.mxu0 %v921
        %1010 = vmatmul.f32.gmra.mxu0 %v977
        %v1011 = vpop.f32.mrf.mxu0
        %v1012 = vadd.f32 %v948, %v1011
        %1013 = vmatmul.f32.gmra.mxu0 %v980
        %v1014 = vpop.f32.mrf.mxu0
        %v1015 = vadd.f32 %v953, %v1014
        %1016 = vmatmul.f32.gmra.mxu0 %v983
        %v1017 = vpop.f32.mrf.mxu0
        %v1018 = vadd.f32 %v958, %v1017
        %1019 = vmatmul.f32.gmra.mxu0 %v986
        %v1020 = vpop.f32.mrf.mxu0
        %v1021 = vadd.f32 %v963, %v1020
        %1022 = vmatmul.f32.gmra.mxu0 %v989
        %v1023 = vpop.f32.mrf.mxu0
        %v1024 = vadd.f32 %v968, %v1023
        %1025 = vmatmul.f32.gmra.mxu0 %v992
        %v1026 = vpop.f32.mrf.mxu0
        %v1027 = vadd.f32 %v973, %v1026
        %1028 = vdwg.mxu0
        %1029 = vmatpush.msra.mxu0 0.0
        %1030 = vmatpush.msra.mxu0 0.0
        %1031 = vmatpush.msra.mxu0 0.0
        %1032 = vmatpush.msra.mxu0 0.0
        %1033 = vmatpush.msra.mxu0 0.0
        %1034 = vmatpush.msra.mxu0 0.0
        %1035 = vmatpush.msra.mxu0 0.0
        %1036 = vmatpush.msra.mxu0 0.0
        %1037 = vmatpush.msra.mxu0 0.0
        %1038 = vmatpush.msra.mxu0 0.0
        %1039 = vmatpush.msra.mxu0 0.0
        %1040 = vmatpush.msra.mxu0 0.0
        %1041 = vmatpush.msra.mxu0 0.0
        %1042 = vmatpush.msra.mxu0 %v930
        %1043 = vmatpush.msra.mxu0 %v926
        %1044 = vmatpush.msra.mxu0 %v922
        %1045 = vmatmul.f32.gmra.mxu0 %v977
        %v1046 = vpop.f32.mrf.mxu0
        %v1047 = vadd.f32 %v948, %v1046
        %1048 = vmatmul.f32.gmra.mxu0 %v980
        %v1049 = vpop.f32.mrf.mxu0
        %v1050 = vadd.f32 %v953, %v1049
        %1051 = vmatmul.f32.gmra.mxu0 %v983
        %v1052 = vpop.f32.mrf.mxu0
        %v1053 = vadd.f32 %v958, %v1052
        %1054 = vmatmul.f32.gmra.mxu0 %v986
        %v1055 = vpop.f32.mrf.mxu0
        %v1056 = vadd.f32 %v963, %v1055
        %1057 = vmatmul.f32.gmra.mxu0 %v989
        %v1058 = vpop.f32.mrf.mxu0
        %v1059 = vadd.f32 %v968, %v1058
        %1060 = vmatmul.f32.gmra.mxu0 %v992
        %v1061 = vpop.f32.mrf.mxu0
        %v1062 = vadd.f32 %v973, %v1061
        %1063 = vdwg.mxu0
        %1064 = vmatpush.msra.mxu0 0.0
        %1065 = vmatpush.msra.mxu0 0.0
        %1066 = vmatpush.msra.mxu0 0.0
        %1067 = vmatpush.msra.mxu0 0.0
        %1068 = vmatpush.msra.mxu0 0.0
        %1069 = vmatpush.msra.mxu0 0.0
        %1070 = vmatpush.msra.mxu0 0.0
        %1071 = vmatpush.msra.mxu0 0.0
        %1072 = vmatpush.msra.mxu0 0.0
        %1073 = vmatpush.msra.mxu0 0.0
        %1074 = vmatpush.msra.mxu0 0.0
        %1075 = vmatpush.msra.mxu0 0.0
        %1076 = vmatpush.msra.mxu0 0.0
        %1077 = vmatpush.msra.mxu0 %v931
        %1078 = vmatpush.msra.mxu0 %v927
        %1079 = vmatpush.msra.mxu0 %v923
        %1080 = vmatmul.f32.gmra.mxu0 %v977
        %v1081 = vpop.f32.mrf.mxu0
        %v1082 = vadd.f32 %v948, %v1081
        %1083 = vmatmul.f32.gmra.mxu0 %v980
        %v1084 = vpop.f32.mrf.mxu0
        %v1085 = vadd.f32 %v953, %v1084
        %1086 = vmatmul.f32.gmra.mxu0 %v983
        %v1087 = vpop.f32.mrf.mxu0
        %v1088 = vadd.f32 %v958, %v1087
        %1089 = vmatmul.f32.gmra.mxu0 %v986
        %v1090 = vpop.f32.mrf.mxu0
        %v1091 = vadd.f32 %v963, %v1090
        %1092 = vmatmul.f32.gmra.mxu0 %v989
        %v1093 = vpop.f32.mrf.mxu0
        %v1094 = vadd.f32 %v968, %v1093
        %1095 = vmatmul.f32.gmra.mxu0 %v992
        %v1096 = vpop.f32.mrf.mxu0
        %v1097 = vadd.f32 %v973, %v1096
        %1098 = vdwg.mxu0
        %1099 = vmatpush.msra.mxu0 0.0
        %1100 = vmatpush.msra.mxu0 0.0
        %1101 = vmatpush.msra.mxu0 0.0
        %1102 = vmatpush.msra.mxu0 0.0
        %1103 = vmatpush.msra.mxu0 0.0
        %1104 = vmatpush.msra.mxu0 0.0
        %1105 = vmatpush.msra.mxu0 0.0
        %1106 = vmatpush.msra.mxu0 0.0
        %1107 = vmatpush.msra.mxu0 0.0
        %1108 = vmatpush.msra.mxu0 0.0
        %1109 = vmatpush.msra.mxu0 0.0
        %1110 = vmatpush.msra.mxu0 0.0
        %1111 = vmatpush.msra.mxu0 0.0
        %1112 = vmatpush.msra.mxu0 %v932
        %1113 = vmatpush.msra.mxu0 %v928
        %1114 = vmatpush.msra.mxu0 %v924
        %1115 = vmatmul.f32.gmra.mxu0 %v977
        %v1116 = vpop.f32.mrf.mxu0
        %v1117 = vadd.f32 %v948, %v1116
        %1118 = vmatmul.f32.gmra.mxu0 %v980
        %v1119 = vpop.f32.mrf.mxu0
        %v1120 = vadd.f32 %v953, %v1119
        %1121 = vmatmul.f32.gmra.mxu0 %v983
        %v1122 = vpop.f32.mrf.mxu0
        %v1123 = vadd.f32 %v958, %v1122
        %1124 = vmatmul.f32.gmra.mxu0 %v986
        %v1125 = vpop.f32.mrf.mxu0
        %v1126 = vadd.f32 %v963, %v1125
        %1127 = vmatmul.f32.gmra.mxu0 %v989
        %v1128 = vpop.f32.mrf.mxu0
        %v1129 = vadd.f32 %v968, %v1128
        %1130 = vmatmul.f32.gmra.mxu0 %v992
        %v1131 = vpop.f32.mrf.mxu0
        %v1132 = vadd.f32 %v973, %v1131
        %1133 = vdwg.mxu0
        %v1134 = vmin.f32 %v1012, 20.0
        %v1135 = vmin.f32 %v1047, 20.0
        %v1136 = vmin.f32 %v1082, 20.0
        %v1137 = vmin.f32 %v1117, 20.0
        %v1138 = vmin.f32 %v1015, 20.0
        %v1139 = vmin.f32 %v1050, 20.0
        %v1140 = vmin.f32 %v1085, 20.0
        %v1141 = vmin.f32 %v1120, 20.0
        %v1142 = vmin.f32 %v1018, 20.0
        %v1143 = vmin.f32 %v1053, 20.0
        %v1144 = vmin.f32 %v1088, 20.0
        %v1145 = vmin.f32 %v1123, 20.0
        %v1146 = vmin.f32 %v1021, 20.0
        %v1147 = vmin.f32 %v1056, 20.0
        %v1148 = vmin.f32 %v1091, 20.0
        %v1149 = vmin.f32 %v1126, 20.0
        %v1150 = vmin.f32 %v1024, 20.0
        %v1151 = vmin.f32 %v1059, 20.0
        %v1152 = vmin.f32 %v1094, 20.0
        %v1153 = vmin.f32 %v1129, 20.0
        %v1154 = vmin.f32 %v1027, 20.0
        %v1155 = vmin.f32 %v1062, 20.0
        %v1156 = vmin.f32 %v1097, 20.0
        %v1157 = vmin.f32 %v1132, 20.0
        %v1158 = vmul.f32 %v1134, 1.442695
        %v1159 = vpow.pop %v1158
        %v1160 = vmul.f32 %v1135, 1.442695
        %v1161 = vpow.pop %v1160
        %v1162 = vmul.f32 %v1136, 1.442695
        %v1163 = vpow.pop %v1162
        %v1164 = vmul.f32 %v1137, 1.442695
        %v1165 = vpow.pop %v1164
        %v1166 = vmul.f32 %v1138, 1.442695
        %v1167 = vpow.pop %v1166
        %v1168 = vmul.f32 %v1139, 1.442695
        %v1169 = vpow.pop %v1168
        %v1170 = vmul.f32 %v1140, 1.442695
        %v1171 = vpow.pop %v1170
        %v1172 = vmul.f32 %v1141, 1.442695
        %v1173 = vpow.pop %v1172
        %v1174 = vmul.f32 %v1142, 1.442695
        %v1175 = vpow.pop %v1174
        %v1176 = vmul.f32 %v1143, 1.442695
        %v1177 = vpow.pop %v1176
        %v1178 = vmul.f32 %v1144, 1.442695
        %v1179 = vpow.pop %v1178
        %v1180 = vmul.f32 %v1145, 1.442695
        %v1181 = vpow.pop %v1180
        %v1182 = vmul.f32 %v1146, 1.442695
        %v1183 = vpow.pop %v1182
        %v1184 = vmul.f32 %v1147, 1.442695
        %v1185 = vpow.pop %v1184
        %v1186 = vmul.f32 %v1148, 1.442695
        %v1187 = vpow.pop %v1186
        %v1188 = vmul.f32 %v1149, 1.442695
        %v1189 = vpow.pop %v1188
        %v1190 = vmul.f32 %v1150, 1.442695
        %v1191 = vpow.pop %v1190
        %v1192 = vmul.f32 %v1151, 1.442695
        %v1193 = vpow.pop %v1192
        %v1194 = vmul.f32 %v1152, 1.442695
        %v1195 = vpow.pop %v1194
        %v1196 = vmul.f32 %v1153, 1.442695
        %v1197 = vpow.pop %v1196
        %v1198 = vmul.f32 %v1154, 1.442695
        %v1199 = vpow.pop %v1198
        %v1200 = vmul.f32 %v1155, 1.442695
        %v1201 = vpow.pop %v1200
        %v1202 = vmul.f32 %v1156, 1.442695
        %v1203 = vpow.pop %v1202
        %v1204 = vmul.f32 %v1157, 1.442695
        %v1205 = vpow.pop %v1204
        %v1206 = vadd.f32 %v1159, 2.0
        %v1207 = vadd.f32 %v1161, 2.0
        %v1208 = vadd.f32 %v1163, 2.0
        %v1209 = vadd.f32 %v1165, 2.0
        %v1210 = vadd.f32 %v1167, 2.0
        %v1211 = vadd.f32 %v1169, 2.0
        %v1212 = vadd.f32 %v1171, 2.0
        %v1213 = vadd.f32 %v1173, 2.0
        %v1214 = vadd.f32 %v1175, 2.0
        %v1215 = vadd.f32 %v1177, 2.0
        %v1216 = vadd.f32 %v1179, 2.0
        %v1217 = vadd.f32 %v1181, 2.0
        %v1218 = vadd.f32 %v1183, 2.0
        %v1219 = vadd.f32 %v1185, 2.0
        %v1220 = vadd.f32 %v1187, 2.0
        %v1221 = vadd.f32 %v1189, 2.0
        %v1222 = vadd.f32 %v1191, 2.0
        %v1223 = vadd.f32 %v1193, 2.0
        %v1224 = vadd.f32 %v1195, 2.0
        %v1225 = vadd.f32 %v1197, 2.0
        %v1226 = vadd.f32 %v1199, 2.0
        %v1227 = vadd.f32 %v1201, 2.0
        %v1228 = vadd.f32 %v1203, 2.0
        %v1229 = vadd.f32 %v1205, 2.0
        %v1230 = vmul.f32 %v1159, %v1206
        %v1231 = vmul.f32 %v1161, %v1207
        %v1232 = vmul.f32 %v1163, %v1208
        %v1233 = vmul.f32 %v1165, %v1209
        %v1234 = vmul.f32 %v1167, %v1210
        %v1235 = vmul.f32 %v1169, %v1211
        %v1236 = vmul.f32 %v1171, %v1212
        %v1237 = vmul.f32 %v1173, %v1213
        %v1238 = vmul.f32 %v1175, %v1214
        %v1239 = vmul.f32 %v1177, %v1215
        %v1240 = vmul.f32 %v1179, %v1216
        %v1241 = vmul.f32 %v1181, %v1217
        %v1242 = vmul.f32 %v1183, %v1218
        %v1243 = vmul.f32 %v1185, %v1219
        %v1244 = vmul.f32 %v1187, %v1220
        %v1245 = vmul.f32 %v1189, %v1221
        %v1246 = vmul.f32 %v1191, %v1222
        %v1247 = vmul.f32 %v1193, %v1223
        %v1248 = vmul.f32 %v1195, %v1224
        %v1249 = vmul.f32 %v1197, %v1225
        %v1250 = vmul.f32 %v1199, %v1226
        %v1251 = vmul.f32 %v1201, %v1227
        %v1252 = vmul.f32 %v1203, %v1228
        %v1253 = vmul.f32 %v1205, %v1229
        %v1254 = vmul.f32 %v1012, %v1230
        %v1255 = vmul.f32 %v1047, %v1231
        %v1256 = vmul.f32 %v1082, %v1232
        %v1257 = vmul.f32 %v1117, %v1233
        %v1258 = vmul.f32 %v1015, %v1234
        %v1259 = vmul.f32 %v1050, %v1235
        %v1260 = vmul.f32 %v1085, %v1236
        %v1261 = vmul.f32 %v1120, %v1237
        %v1262 = vmul.f32 %v1018, %v1238
        %v1263 = vmul.f32 %v1053, %v1239
        %v1264 = vmul.f32 %v1088, %v1240
        %v1265 = vmul.f32 %v1123, %v1241
        %v1266 = vmul.f32 %v1021, %v1242
        %v1267 = vmul.f32 %v1056, %v1243
        %v1268 = vmul.f32 %v1091, %v1244
        %v1269 = vmul.f32 %v1126, %v1245
        %v1270 = vmul.f32 %v1024, %v1246
        %v1271 = vmul.f32 %v1059, %v1247
        %v1272 = vmul.f32 %v1094, %v1248
        %v1273 = vmul.f32 %v1129, %v1249
        %v1274 = vmul.f32 %v1027, %v1250
        %v1275 = vmul.f32 %v1062, %v1251
        %v1276 = vmul.f32 %v1097, %v1252
        %v1277 = vmul.f32 %v1132, %v1253
        %v1278 = vadd.f32 %v1230, 2.0
        %v1279 = vadd.f32 %v1231, 2.0
        %v1280 = vadd.f32 %v1232, 2.0
        %v1281 = vadd.f32 %v1233, 2.0
        %v1282 = vadd.f32 %v1234, 2.0
        %v1283 = vadd.f32 %v1235, 2.0
        %v1284 = vadd.f32 %v1236, 2.0
        %v1285 = vadd.f32 %v1237, 2.0
        %v1286 = vadd.f32 %v1238, 2.0
        %v1287 = vadd.f32 %v1239, 2.0
        %v1288 = vadd.f32 %v1240, 2.0
        %v1289 = vadd.f32 %v1241, 2.0
        %v1290 = vadd.f32 %v1242, 2.0
        %v1291 = vadd.f32 %v1243, 2.0
        %v1292 = vadd.f32 %v1244, 2.0
        %v1293 = vadd.f32 %v1245, 2.0
        %v1294 = vadd.f32 %v1246, 2.0
        %v1295 = vadd.f32 %v1247, 2.0
        %v1296 = vadd.f32 %v1248, 2.0
        %v1297 = vadd.f32 %v1249, 2.0
        %v1298 = vadd.f32 %v1250, 2.0
        %v1299 = vadd.f32 %v1251, 2.0
        %v1300 = vadd.f32 %v1252, 2.0
        %v1301 = vadd.f32 %v1253, 2.0
        %v1302 = vrcp.pop %v1278
        %v1303 = vrcp.pop %v1279
        %v1304 = vrcp.pop %v1280
        %v1305 = vrcp.pop %v1281
        %v1306 = vrcp.pop %v1282
        %v1307 = vrcp.pop %v1283
        %v1308 = vrcp.pop %v1284
        %v1309 = vrcp.pop %v1285
        %v1310 = vrcp.pop %v1286
        %v1311 = vrcp.pop %v1287
        %v1312 = vrcp.pop %v1288
        %v1313 = vrcp.pop %v1289
        %v1314 = vrcp.pop %v1290
        %v1315 = vrcp.pop %v1291
        %v1316 = vrcp.pop %v1292
        %v1317 = vrcp.pop %v1293
        %v1318 = vrcp.pop %v1294
        %v1319 = vrcp.pop %v1295
        %v1320 = vrcp.pop %v1296
        %v1321 = vrcp.pop %v1297
        %v1322 = vrcp.pop %v1298
        %v1323 = vrcp.pop %v1299
        %v1324 = vrcp.pop %v1300
        %v1325 = vrcp.pop %v1301
        %v1326 = vmul.f32 %v1254, %v1302
        %v1327 = vmul.f32 %v1255, %v1303
        %v1328 = vmul.f32 %v1256, %v1304
        %v1329 = vmul.f32 %v1257, %v1305
        %v1330 = vmul.f32 %v1258, %v1306
        %v1331 = vmul.f32 %v1259, %v1307
        %v1332 = vmul.f32 %v1260, %v1308
        %v1333 = vmul.f32 %v1261, %v1309
        %v1334 = vmul.f32 %v1262, %v1310
        %v1335 = vmul.f32 %v1263, %v1311
        %v1336 = vmul.f32 %v1264, %v1312
        %v1337 = vmul.f32 %v1265, %v1313
        %v1338 = vmul.f32 %v1266, %v1314
        %v1339 = vmul.f32 %v1267, %v1315
        %v1340 = vmul.f32 %v1268, %v1316
        %v1341 = vmul.f32 %v1269, %v1317
        %v1342 = vmul.f32 %v1270, %v1318
        %v1343 = vmul.f32 %v1271, %v1319
        %v1344 = vmul.f32 %v1272, %v1320
        %v1345 = vmul.f32 %v1273, %v1321
        %v1346 = vmul.f32 %v1274, %v1322
        %v1347 = vmul.f32 %v1275, %v1323
        %v1348 = vmul.f32 %v1276, %v1324
        %v1349 = vmul.f32 %v1277, %v1325
        %vm1350 = vcmp.gt.f32.partialorder %v1012, 20.0
        %vm1351 = vcmp.gt.f32.partialorder %v1047, 20.0
        %vm1352 = vcmp.gt.f32.partialorder %v1082, 20.0
        %vm1353 = vcmp.gt.f32.partialorder %v1117, 20.0
        %vm1354 = vcmp.gt.f32.partialorder %v1015, 20.0
        %vm1355 = vcmp.gt.f32.partialorder %v1050, 20.0
        %vm1356 = vcmp.gt.f32.partialorder %v1085, 20.0
        %vm1357 = vcmp.gt.f32.partialorder %v1120, 20.0
        %vm1358 = vcmp.gt.f32.partialorder %v1018, 20.0
        %vm1359 = vcmp.gt.f32.partialorder %v1053, 20.0
        %vm1360 = vcmp.gt.f32.partialorder %v1088, 20.0
        %vm1361 = vcmp.gt.f32.partialorder %v1123, 20.0
        %vm1362 = vcmp.gt.f32.partialorder %v1021, 20.0
        %vm1363 = vcmp.gt.f32.partialorder %v1056, 20.0
        %vm1364 = vcmp.gt.f32.partialorder %v1091, 20.0
        %vm1365 = vcmp.gt.f32.partialorder %v1126, 20.0
        %vm1366 = vcmp.gt.f32.partialorder %v1024, 20.0
        %vm1367 = vcmp.gt.f32.partialorder %v1059, 20.0
        %vm1368 = vcmp.gt.f32.partialorder %v1094, 20.0
        %vm1369 = vcmp.gt.f32.partialorder %v1129, 20.0
        %vm1370 = vcmp.gt.f32.partialorder %v1027, 20.0
        %vm1371 = vcmp.gt.f32.partialorder %v1062, 20.0
        %vm1372 = vcmp.gt.f32.partialorder %v1097, 20.0
        %vm1373 = vcmp.gt.f32.partialorder %v1132, 20.0
        %v1374 = vsel %vm1350, %v1012, %v1326
        %v1375 = vsel %vm1351, %v1047, %v1327
        %v1376 = vsel %vm1352, %v1082, %v1328
        %v1377 = vsel %vm1353, %v1117, %v1329
        %v1378 = vsel %vm1354, %v1015, %v1330
        %v1379 = vsel %vm1355, %v1050, %v1331
        %v1380 = vsel %vm1356, %v1085, %v1332
        %v1381 = vsel %vm1357, %v1120, %v1333
        %v1382 = vsel %vm1358, %v1018, %v1334
        %v1383 = vsel %vm1359, %v1053, %v1335
        %v1384 = vsel %vm1360, %v1088, %v1336
        %v1385 = vsel %vm1361, %v1123, %v1337
        %v1386 = vsel %vm1362, %v1021, %v1338
        %v1387 = vsel %vm1363, %v1056, %v1339
        %v1388 = vsel %vm1364, %v1091, %v1340
        %v1389 = vsel %vm1365, %v1126, %v1341
        %v1390 = vsel %vm1366, %v1024, %v1342
        %v1391 = vsel %vm1367, %v1059, %v1343
        %v1392 = vsel %vm1368, %v1094, %v1344
        %v1393 = vsel %vm1369, %v1129, %v1345
        %v1394 = vsel %vm1370, %v1027, %v1346
        %v1395 = vsel %vm1371, %v1062, %v1347
        %v1396 = vsel %vm1372, %v1097, %v1348
        %v1397 = vsel %vm1373, %v1132, %v1349
        %v1398 = vld [vmem:[%s5] sm:$0xff]
        %v1399 = vld [vmem:[%s5 + $0x8] sm:$0xff]
        %v1400 = vld [vmem:[%s5 + $0x10] sm:$0xff]
        %v1401 = vld [vmem:[%s6] sm:$0xff]
        %v1402 = vld [vmem:[%s6 + $0x8] sm:$0xff]
        %v1403 = vld [vmem:[%s6 + $0x10] sm:$0xff]
        %1405 = vset.pattern.permute.xlu0 0
        %1406 = vperm.xlu0 %1405, %v1401
        %v1407 = vpop.permute.xlu0 %1406
        %1410 = vset.pattern.permute.xlu0 0
        %1411 = vperm.xlu0 %1410, %v1402
        %v1412 = vpop.permute.xlu0 %1411
        %1415 = vset.pattern.permute.xlu0 0
        %1416 = vperm.xlu0 %1415, %v1403
        %v1417 = vpop.permute.xlu0 %1416
        %vm1419 = vcmask 392192
        %v1421 = vsel %vm1419, %v1398, 0
        %v1424 = vsel %vm1419, %v1399, 0
        %v1427 = vsel %vm1419, %v1400, 0
        %1429 = vmatpush.msra.mxu0 0.0
        %1430 = vmatpush.msra.mxu0 0.0
        %1431 = vmatpush.msra.mxu0 0.0
        %1432 = vmatpush.msra.mxu0 0.0
        %1433 = vmatpush.msra.mxu0 0.0
        %1434 = vmatpush.msra.mxu0 0.0
        %1435 = vmatpush.msra.mxu0 0.0
        %1436 = vmatpush.msra.mxu0 0.0
        %1437 = vmatpush.msra.mxu0 0.0
        %1438 = vmatpush.msra.mxu0 0.0
        %1439 = vmatpush.msra.mxu0 %v1394
        %1440 = vmatpush.msra.mxu0 %v1390
        %1441 = vmatpush.msra.mxu0 %v1386
        %1442 = vmatpush.msra.mxu0 %v1382
        %1443 = vmatpush.msra.mxu0 %v1378
        %1444 = vmatpush.msra.mxu0 %v1374
        %1445 = vmatmul.f32.gmra.mxu0 %v1421
        %v1446 = vpop.f32.mrf.mxu0
        %v1447 = vadd.f32 %v1407, %v1446
        %1448 = vmatmul.f32.gmra.mxu0 %v1424
        %v1449 = vpop.f32.mrf.mxu0
        %v1450 = vadd.f32 %v1412, %v1449
        %1451 = vmatmul.f32.gmra.mxu0 %v1427
        %v1452 = vpop.f32.mrf.mxu0
        %v1453 = vadd.f32 %v1417, %v1452
        %1454 = vdwg.mxu0
        %1455 = vmatpush.msra.mxu0 0.0
        %1456 = vmatpush.msra.mxu0 0.0
        %1457 = vmatpush.msra.mxu0 0.0
        %1458 = vmatpush.msra.mxu0 0.0
        %1459 = vmatpush.msra.mxu0 0.0
        %1460 = vmatpush.msra.mxu0 0.0
        %1461 = vmatpush.msra.mxu0 0.0
        %1462 = vmatpush.msra.mxu0 0.0
        %1463 = vmatpush.msra.mxu0 0.0
        %1464 = vmatpush.msra.mxu0 0.0
        %1465 = vmatpush.msra.mxu0 %v1395
        %1466 = vmatpush.msra.mxu0 %v1391
        %1467 = vmatpush.msra.mxu0 %v1387
        %1468 = vmatpush.msra.mxu0 %v1383
        %1469 = vmatpush.msra.mxu0 %v1379
        %1470 = vmatpush.msra.mxu0 %v1375
        %1471 = vmatmul.f32.gmra.mxu0 %v1421
        %v1472 = vpop.f32.mrf.mxu0
        %v1473 = vadd.f32 %v1407, %v1472
        %1474 = vmatmul.f32.gmra.mxu0 %v1424
        %v1475 = vpop.f32.mrf.mxu0
        %v1476 = vadd.f32 %v1412, %v1475
        %1477 = vmatmul.f32.gmra.mxu0 %v1427
        %v1478 = vpop.f32.mrf.mxu0
        %v1479 = vadd.f32 %v1417, %v1478
        %1480 = vdwg.mxu0
        %1481 = vmatpush.msra.mxu0 0.0
        %1482 = vmatpush.msra.mxu0 0.0
        %1483 = vmatpush.msra.mxu0 0.0
        %1484 = vmatpush.msra.mxu0 0.0
        %1485 = vmatpush.msra.mxu0 0.0
        %1486 = vmatpush.msra.mxu0 0.0
        %1487 = vmatpush.msra.mxu0 0.0
        %1488 = vmatpush.msra.mxu0 0.0
        %1489 = vmatpush.msra.mxu0 0.0
        %1490 = vmatpush.msra.mxu0 0.0
        %1491 = vmatpush.msra.mxu0 %v1396
        %1492 = vmatpush.msra.mxu0 %v1392
        %1493 = vmatpush.msra.mxu0 %v1388
        %1494 = vmatpush.msra.mxu0 %v1384
        %1495 = vmatpush.msra.mxu0 %v1380
        %1496 = vmatpush.msra.mxu0 %v1376
        %1497 = vmatmul.f32.gmra.mxu0 %v1421
        %v1498 = vpop.f32.mrf.mxu0
        %v1499 = vadd.f32 %v1407, %v1498
        %1500 = vmatmul.f32.gmra.mxu0 %v1424
        %v1501 = vpop.f32.mrf.mxu0
        %v1502 = vadd.f32 %v1412, %v1501
        %1503 = vmatmul.f32.gmra.mxu0 %v1427
        %v1504 = vpop.f32.mrf.mxu0
        %v1505 = vadd.f32 %v1417, %v1504
        %1506 = vdwg.mxu0
        %1507 = vmatpush.msra.mxu0 0.0
        %1508 = vmatpush.msra.mxu0 0.0
        %1509 = vmatpush.msra.mxu0 0.0
        %1510 = vmatpush.msra.mxu0 0.0
        %1511 = vmatpush.msra.mxu0 0.0
        %1512 = vmatpush.msra.mxu0 0.0
        %1513 = vmatpush.msra.mxu0 0.0
        %1514 = vmatpush.msra.mxu0 0.0
        %1515 = vmatpush.msra.mxu0 0.0
        %1516 = vmatpush.msra.mxu0 0.0
        %1517 = vmatpush.msra.mxu0 %v1397
        %1518 = vmatpush.msra.mxu0 %v1393
        %1519 = vmatpush.msra.mxu0 %v1389
        %1520 = vmatpush.msra.mxu0 %v1385
        %1521 = vmatpush.msra.mxu0 %v1381
        %1522 = vmatpush.msra.mxu0 %v1377
        %1523 = vmatmul.f32.gmra.mxu0 %v1421
        %v1524 = vpop.f32.mrf.mxu0
        %v1525 = vadd.f32 %v1407, %v1524
        %1526 = vmatmul.f32.gmra.mxu0 %v1424
        %v1527 = vpop.f32.mrf.mxu0
        %v1528 = vadd.f32 %v1412, %v1527
        %1529 = vmatmul.f32.gmra.mxu0 %v1427
        %v1530 = vpop.f32.mrf.mxu0
        %v1531 = vadd.f32 %v1417, %v1530
        %1532 = vdwg.mxu0
        %v1533 = vmin.f32 %v1447, 20.0
        %v1534 = vmin.f32 %v1473, 20.0
        %v1535 = vmin.f32 %v1499, 20.0
        %v1536 = vmin.f32 %v1525, 20.0
        %v1537 = vmin.f32 %v1450, 20.0
        %v1538 = vmin.f32 %v1476, 20.0
        %v1539 = vmin.f32 %v1502, 20.0
        %v1540 = vmin.f32 %v1528, 20.0
        %v1541 = vmin.f32 %v1453, 20.0
        %v1542 = vmin.f32 %v1479, 20.0
        %v1543 = vmin.f32 %v1505, 20.0
        %v1544 = vmin.f32 %v1531, 20.0
        %v1545 = vmul.f32 %v1533, 1.442695
        %v1546 = vpow.pop %v1545
        %v1547 = vmul.f32 %v1534, 1.442695
        %v1548 = vpow.pop %v1547
        %v1549 = vmul.f32 %v1535, 1.442695
        %v1550 = vpow.pop %v1549
        %v1551 = vmul.f32 %v1536, 1.442695
        %v1552 = vpow.pop %v1551
        %v1553 = vmul.f32 %v1537, 1.442695
        %v1554 = vpow.pop %v1553
        %v1555 = vmul.f32 %v1538, 1.442695
        %v1556 = vpow.pop %v1555
        %v1557 = vmul.f32 %v1539, 1.442695
        %v1558 = vpow.pop %v1557
        %v1559 = vmul.f32 %v1540, 1.442695
        %v1560 = vpow.pop %v1559
        %v1561 = vmul.f32 %v1541, 1.442695
        %v1562 = vpow.pop %v1561
        %v1563 = vmul.f32 %v1542, 1.442695
        %v1564 = vpow.pop %v1563
        %v1565 = vmul.f32 %v1543, 1.442695
        %v1566 = vpow.pop %v1565
        %v1567 = vmul.f32 %v1544, 1.442695
        %v1568 = vpow.pop %v1567
        %v1569 = vadd.f32 %v1546, 2.0
        %v1570 = vadd.f32 %v1548, 2.0
        %v1571 = vadd.f32 %v1550, 2.0
        %v1572 = vadd.f32 %v1552, 2.0
        %v1573 = vadd.f32 %v1554, 2.0
        %v1574 = vadd.f32 %v1556, 2.0
        %v1575 = vadd.f32 %v1558, 2.0
        %v1576 = vadd.f32 %v1560, 2.0
        %v1577 = vadd.f32 %v1562, 2.0
        %v1578 = vadd.f32 %v1564, 2.0
        %v1579 = vadd.f32 %v1566, 2.0
        %v1580 = vadd.f32 %v1568, 2.0
        %v1581 = vmul.f32 %v1546, %v1569
        %v1582 = vmul.f32 %v1548, %v1570
        %v1583 = vmul.f32 %v1550, %v1571
        %v1584 = vmul.f32 %v1552, %v1572
        %v1585 = vmul.f32 %v1554, %v1573
        %v1586 = vmul.f32 %v1556, %v1574
        %v1587 = vmul.f32 %v1558, %v1575
        %v1588 = vmul.f32 %v1560, %v1576
        %v1589 = vmul.f32 %v1562, %v1577
        %v1590 = vmul.f32 %v1564, %v1578
        %v1591 = vmul.f32 %v1566, %v1579
        %v1592 = vmul.f32 %v1568, %v1580
        %v1593 = vmul.f32 %v1447, %v1581
        %v1594 = vmul.f32 %v1473, %v1582
        %v1595 = vmul.f32 %v1499, %v1583
        %v1596 = vmul.f32 %v1525, %v1584
        %v1597 = vmul.f32 %v1450, %v1585
        %v1598 = vmul.f32 %v1476, %v1586
        %v1599 = vmul.f32 %v1502, %v1587
        %v1600 = vmul.f32 %v1528, %v1588
        %v1601 = vmul.f32 %v1453, %v1589
        %v1602 = vmul.f32 %v1479, %v1590
        %v1603 = vmul.f32 %v1505, %v1591
        %v1604 = vmul.f32 %v1531, %v1592
        %v1605 = vadd.f32 %v1581, 2.0
        %v1606 = vadd.f32 %v1582, 2.0
        %v1607 = vadd.f32 %v1583, 2.0
        %v1608 = vadd.f32 %v1584, 2.0
        %v1609 = vadd.f32 %v1585, 2.0
        %v1610 = vadd.f32 %v1586, 2.0
        %v1611 = vadd.f32 %v1587, 2.0
        %v1612 = vadd.f32 %v1588, 2.0
        %v1613 = vadd.f32 %v1589, 2.0
        %v1614 = vadd.f32 %v1590, 2.0
        %v1615 = vadd.f32 %v1591, 2.0
        %v1616 = vadd.f32 %v1592, 2.0
        %v1617 = vrcp.pop %v1605
        %v1618 = vrcp.pop %v1606
        %v1619 = vrcp.pop %v1607
        %v1620 = vrcp.pop %v1608
        %v1621 = vrcp.pop %v1609
        %v1622 = vrcp.pop %v1610
        %v1623 = vrcp.pop %v1611
        %v1624 = vrcp.pop %v1612
        %v1625 = vrcp.pop %v1613
        %v1626 = vrcp.pop %v1614
        %v1627 = vrcp.pop %v1615
        %v1628 = vrcp.pop %v1616
        %v1629 = vmul.f32 %v1593, %v1617
        %v1630 = vmul.f32 %v1594, %v1618
        %v1631 = vmul.f32 %v1595, %v1619
        %v1632 = vmul.f32 %v1596, %v1620
        %v1633 = vmul.f32 %v1597, %v1621
        %v1634 = vmul.f32 %v1598, %v1622
        %v1635 = vmul.f32 %v1599, %v1623
        %v1636 = vmul.f32 %v1600, %v1624
        %v1637 = vmul.f32 %v1601, %v1625
        %v1638 = vmul.f32 %v1602, %v1626
        %v1639 = vmul.f32 %v1603, %v1627
        %v1640 = vmul.f32 %v1604, %v1628
        %vm1641 = vcmp.gt.f32.partialorder %v1447, 20.0
        %vm1642 = vcmp.gt.f32.partialorder %v1473, 20.0
        %vm1643 = vcmp.gt.f32.partialorder %v1499, 20.0
        %vm1644 = vcmp.gt.f32.partialorder %v1525, 20.0
        %vm1645 = vcmp.gt.f32.partialorder %v1450, 20.0
        %vm1646 = vcmp.gt.f32.partialorder %v1476, 20.0
        %vm1647 = vcmp.gt.f32.partialorder %v1502, 20.0
        %vm1648 = vcmp.gt.f32.partialorder %v1528, 20.0
        %vm1649 = vcmp.gt.f32.partialorder %v1453, 20.0
        %vm1650 = vcmp.gt.f32.partialorder %v1479, 20.0
        %vm1651 = vcmp.gt.f32.partialorder %v1505, 20.0
        %vm1652 = vcmp.gt.f32.partialorder %v1531, 20.0
        %v1653 = vsel %vm1641, %v1447, %v1629
        %v1654 = vsel %vm1642, %v1473, %v1630
        %v1655 = vsel %vm1643, %v1499, %v1631
        %v1656 = vsel %vm1644, %v1525, %v1632
        %v1657 = vsel %vm1645, %v1450, %v1633
        %v1658 = vsel %vm1646, %v1476, %v1634
        %v1659 = vsel %vm1647, %v1502, %v1635
        %v1660 = vsel %vm1648, %v1528, %v1636
        %v1661 = vsel %vm1649, %v1453, %v1637
        %v1662 = vsel %vm1650, %v1479, %v1638
        %v1663 = vsel %vm1651, %v1505, %v1639
        %v1664 = vsel %vm1652, %v1531, %v1640
        %v1665 = vld [vmem:[%s7] sm:$0xff]
        %v1666 = vld [vmem:[%s7 + $0x8] sm:$0xff]
        %v1667 = vld [vmem:[%s7 + $0x10] sm:$0xff]
        %v1668 = vld [vmem:[%s8] sm:$0xff]
        %v1669 = vld [vmem:[%s8 + $0x8] sm:$0xff]
        %v1670 = vld [vmem:[%s8 + $0x10] sm:$0xff]
        %1672 = vset.pattern.permute.xlu0 0
        %1673 = vperm.xlu0 %1672, %v1668
        %v1674 = vpop.permute.xlu0 %1673
        %1677 = vset.pattern.permute.xlu0 0
        %1678 = vperm.xlu0 %1677, %v1669
        %v1679 = vpop.permute.xlu0 %1678
        %1682 = vset.pattern.permute.xlu0 0
        %1683 = vperm.xlu0 %1682, %v1670
        %v1684 = vpop.permute.xlu0 %1683
        %v1687 = vsel %vm975, %v1665, 0
        %v1690 = vsel %vm975, %v1666, 0
        %v1693 = vsel %vm975, %v1667, 0
        %1695 = vmatpush.msra.mxu0 0.0
        %1696 = vmatpush.msra.mxu0 0.0
        %1697 = vmatpush.msra.mxu0 0.0
        %1698 = vmatpush.msra.mxu0 0.0
        %1699 = vmatpush.msra.mxu0 0.0
        %1700 = vmatpush.msra.mxu0 0.0
        %1701 = vmatpush.msra.mxu0 0.0
        %1702 = vmatpush.msra.mxu0 0.0
        %1703 = vmatpush.msra.mxu0 0.0
        %1704 = vmatpush.msra.mxu0 0.0
        %1705 = vmatpush.msra.mxu0 0.0
        %1706 = vmatpush.msra.mxu0 0.0
        %1707 = vmatpush.msra.mxu0 0.0
        %1708 = vmatpush.msra.mxu0 %v1661
        %1709 = vmatpush.msra.mxu0 %v1657
        %1710 = vmatpush.msra.mxu0 %v1653
        %1711 = vmatmul.f32.gmra.mxu0 %v1687
        %v1712 = vpop.f32.mrf.mxu0
        %v1713 = vadd.f32 %v1674, %v1712
        %1714 = vmatmul.f32.gmra.mxu0 %v1690
        %v1715 = vpop.f32.mrf.mxu0
        %v1716 = vadd.f32 %v1679, %v1715
        %1717 = vmatmul.f32.gmra.mxu0 %v1693
        %v1718 = vpop.f32.mrf.mxu0
        %v1719 = vadd.f32 %v1684, %v1718
        %1720 = vdwg.mxu0
        %1721 = vmatpush.msra.mxu0 0.0
        %1722 = vmatpush.msra.mxu0 0.0
        %1723 = vmatpush.msra.mxu0 0.0
        %1724 = vmatpush.msra.mxu0 0.0
        %1725 = vmatpush.msra.mxu0 0.0
        %1726 = vmatpush.msra.mxu0 0.0
        %1727 = vmatpush.msra.mxu0 0.0
        %1728 = vmatpush.msra.mxu0 0.0
        %1729 = vmatpush.msra.mxu0 0.0
        %1730 = vmatpush.msra.mxu0 0.0
        %1731 = vmatpush.msra.mxu0 0.0
        %1732 = vmatpush.msra.mxu0 0.0
        %1733 = vmatpush.msra.mxu0 0.0
        %1734 = vmatpush.msra.mxu0 %v1662
        %1735 = vmatpush.msra.mxu0 %v1658
        %1736 = vmatpush.msra.mxu0 %v1654
        %1737 = vmatmul.f32.gmra.mxu0 %v1687
        %v1738 = vpop.f32.mrf.mxu0
        %v1739 = vadd.f32 %v1674, %v1738
        %1740 = vmatmul.f32.gmra.mxu0 %v1690
        %v1741 = vpop.f32.mrf.mxu0
        %v1742 = vadd.f32 %v1679, %v1741
        %1743 = vmatmul.f32.gmra.mxu0 %v1693
        %v1744 = vpop.f32.mrf.mxu0
        %v1745 = vadd.f32 %v1684, %v1744
        %1746 = vdwg.mxu0
        %1747 = vmatpush.msra.mxu0 0.0
        %1748 = vmatpush.msra.mxu0 0.0
        %1749 = vmatpush.msra.mxu0 0.0
        %1750 = vmatpush.msra.mxu0 0.0
        %1751 = vmatpush.msra.mxu0 0.0
        %1752 = vmatpush.msra.mxu0 0.0
        %1753 = vmatpush.msra.mxu0 0.0
        %1754 = vmatpush.msra.mxu0 0.0
        %1755 = vmatpush.msra.mxu0 0.0
        %1756 = vmatpush.msra.mxu0 0.0
        %1757 = vmatpush.msra.mxu0 0.0
        %1758 = vmatpush.msra.mxu0 0.0
        %1759 = vmatpush.msra.mxu0 0.0
        %1760 = vmatpush.msra.mxu0 %v1663
        %1761 = vmatpush.msra.mxu0 %v1659
        %1762 = vmatpush.msra.mxu0 %v1655
        %1763 = vmatmul.f32.gmra.mxu0 %v1687
        %v1764 = vpop.f32.mrf.mxu0
        %v1765 = vadd.f32 %v1674, %v1764
        %1766 = vmatmul.f32.gmra.mxu0 %v1690
        %v1767 = vpop.f32.mrf.mxu0
        %v1768 = vadd.f32 %v1679, %v1767
        %1769 = vmatmul.f32.gmra.mxu0 %v1693
        %v1770 = vpop.f32.mrf.mxu0
        %v1771 = vadd.f32 %v1684, %v1770
        %1772 = vdwg.mxu0
        %1773 = vmatpush.msra.mxu0 0.0
        %1774 = vmatpush.msra.mxu0 0.0
        %1775 = vmatpush.msra.mxu0 0.0
        %1776 = vmatpush.msra.mxu0 0.0
        %1777 = vmatpush.msra.mxu0 0.0
        %1778 = vmatpush.msra.mxu0 0.0
        %1779 = vmatpush.msra.mxu0 0.0
        %1780 = vmatpush.msra.mxu0 0.0
        %1781 = vmatpush.msra.mxu0 0.0
        %1782 = vmatpush.msra.mxu0 0.0
        %1783 = vmatpush.msra.mxu0 0.0
        %1784 = vmatpush.msra.mxu0 0.0
        %1785 = vmatpush.msra.mxu0 0.0
        %1786 = vmatpush.msra.mxu0 %v1664
        %1787 = vmatpush.msra.mxu0 %v1660
        %1788 = vmatpush.msra.mxu0 %v1656
        %1789 = vmatmul.f32.gmra.mxu0 %v1687
        %v1790 = vpop.f32.mrf.mxu0
        %v1791 = vadd.f32 %v1674, %v1790
        %1792 = vmatmul.f32.gmra.mxu0 %v1690
        %v1793 = vpop.f32.mrf.mxu0
        %v1794 = vadd.f32 %v1679, %v1793
        %1795 = vmatmul.f32.gmra.mxu0 %v1693
        %v1796 = vpop.f32.mrf.mxu0
        %v1797 = vadd.f32 %v1684, %v1796
        %1798 = vdwg.mxu0
        %v1799 = vmin.f32 %v1713, 20.0
        %v1800 = vmin.f32 %v1739, 20.0
        %v1801 = vmin.f32 %v1765, 20.0
        %v1802 = vmin.f32 %v1791, 20.0
        %v1803 = vmin.f32 %v1716, 20.0
        %v1804 = vmin.f32 %v1742, 20.0
        %v1805 = vmin.f32 %v1768, 20.0
        %v1806 = vmin.f32 %v1794, 20.0
        %v1807 = vmin.f32 %v1719, 20.0
        %v1808 = vmin.f32 %v1745, 20.0
        %v1809 = vmin.f32 %v1771, 20.0
        %v1810 = vmin.f32 %v1797, 20.0
        %v1811 = vmul.f32 %v1799, 1.442695
        %v1812 = vpow.pop %v1811
        %v1813 = vmul.f32 %v1800, 1.442695
        %v1814 = vpow.pop %v1813
        %v1815 = vmul.f32 %v1801, 1.442695
        %v1816 = vpow.pop %v1815
        %v1817 = vmul.f32 %v1802, 1.442695
        %v1818 = vpow.pop %v1817
        %v1819 = vmul.f32 %v1803, 1.442695
        %v1820 = vpow.pop %v1819
        %v1821 = vmul.f32 %v1804, 1.442695
        %v1822 = vpow.pop %v1821
        %v1823 = vmul.f32 %v1805, 1.442695
        %v1824 = vpow.pop %v1823
        %v1825 = vmul.f32 %v1806, 1.442695
        %v1826 = vpow.pop %v1825
        %v1827 = vmul.f32 %v1807, 1.442695
        %v1828 = vpow.pop %v1827
        %v1829 = vmul.f32 %v1808, 1.442695
        %v1830 = vpow.pop %v1829
        %v1831 = vmul.f32 %v1809, 1.442695
        %v1832 = vpow.pop %v1831
        %v1833 = vmul.f32 %v1810, 1.442695
        %v1834 = vpow.pop %v1833
        %v1835 = vadd.f32 %v1812, 2.0
        %v1836 = vadd.f32 %v1814, 2.0
        %v1837 = vadd.f32 %v1816, 2.0
        %v1838 = vadd.f32 %v1818, 2.0
        %v1839 = vadd.f32 %v1820, 2.0
        %v1840 = vadd.f32 %v1822, 2.0
        %v1841 = vadd.f32 %v1824, 2.0
        %v1842 = vadd.f32 %v1826, 2.0
        %v1843 = vadd.f32 %v1828, 2.0
        %v1844 = vadd.f32 %v1830, 2.0
        %v1845 = vadd.f32 %v1832, 2.0
        %v1846 = vadd.f32 %v1834, 2.0
        %v1847 = vmul.f32 %v1812, %v1835
        %v1848 = vmul.f32 %v1814, %v1836
        %v1849 = vmul.f32 %v1816, %v1837
        %v1850 = vmul.f32 %v1818, %v1838
        %v1851 = vmul.f32 %v1820, %v1839
        %v1852 = vmul.f32 %v1822, %v1840
        %v1853 = vmul.f32 %v1824, %v1841
        %v1854 = vmul.f32 %v1826, %v1842
        %v1855 = vmul.f32 %v1828, %v1843
        %v1856 = vmul.f32 %v1830, %v1844
        %v1857 = vmul.f32 %v1832, %v1845
        %v1858 = vmul.f32 %v1834, %v1846
        %v1859 = vmul.f32 %v1713, %v1847
        %v1860 = vmul.f32 %v1739, %v1848
        %v1861 = vmul.f32 %v1765, %v1849
        %v1862 = vmul.f32 %v1791, %v1850
        %v1863 = vmul.f32 %v1716, %v1851
        %v1864 = vmul.f32 %v1742, %v1852
        %v1865 = vmul.f32 %v1768, %v1853
        %v1866 = vmul.f32 %v1794, %v1854
        %v1867 = vmul.f32 %v1719, %v1855
        %v1868 = vmul.f32 %v1745, %v1856
        %v1869 = vmul.f32 %v1771, %v1857
        %v1870 = vmul.f32 %v1797, %v1858
        %v1871 = vadd.f32 %v1847, 2.0
        %v1872 = vadd.f32 %v1848, 2.0
        %v1873 = vadd.f32 %v1849, 2.0
        %v1874 = vadd.f32 %v1850, 2.0
        %v1875 = vadd.f32 %v1851, 2.0
        %v1876 = vadd.f32 %v1852, 2.0
        %v1877 = vadd.f32 %v1853, 2.0
        %v1878 = vadd.f32 %v1854, 2.0
        %v1879 = vadd.f32 %v1855, 2.0
        %v1880 = vadd.f32 %v1856, 2.0
        %v1881 = vadd.f32 %v1857, 2.0
        %v1882 = vadd.f32 %v1858, 2.0
        %v1883 = vrcp.pop %v1871
        %v1884 = vrcp.pop %v1872
        %v1885 = vrcp.pop %v1873
        %v1886 = vrcp.pop %v1874
        %v1887 = vrcp.pop %v1875
        %v1888 = vrcp.pop %v1876
        %v1889 = vrcp.pop %v1877
        %v1890 = vrcp.pop %v1878
        %v1891 = vrcp.pop %v1879
        %v1892 = vrcp.pop %v1880
        %v1893 = vrcp.pop %v1881
        %v1894 = vrcp.pop %v1882
        %v1895 = vmul.f32 %v1859, %v1883
        %v1896 = vmul.f32 %v1860, %v1884
        %v1897 = vmul.f32 %v1861, %v1885
        %v1898 = vmul.f32 %v1862, %v1886
        %v1899 = vmul.f32 %v1863, %v1887
        %v1900 = vmul.f32 %v1864, %v1888
        %v1901 = vmul.f32 %v1865, %v1889
        %v1902 = vmul.f32 %v1866, %v1890
        %v1903 = vmul.f32 %v1867, %v1891
        %v1904 = vmul.f32 %v1868, %v1892
        %v1905 = vmul.f32 %v1869, %v1893
        %v1906 = vmul.f32 %v1870, %v1894
        %vm1907 = vcmp.gt.f32.partialorder %v1713, 20.0
        %vm1908 = vcmp.gt.f32.partialorder %v1739, 20.0
        %vm1909 = vcmp.gt.f32.partialorder %v1765, 20.0
        %vm1910 = vcmp.gt.f32.partialorder %v1791, 20.0
        %vm1911 = vcmp.gt.f32.partialorder %v1716, 20.0
        %vm1912 = vcmp.gt.f32.partialorder %v1742, 20.0
        %vm1913 = vcmp.gt.f32.partialorder %v1768, 20.0
        %vm1914 = vcmp.gt.f32.partialorder %v1794, 20.0
        %vm1915 = vcmp.gt.f32.partialorder %v1719, 20.0
        %vm1916 = vcmp.gt.f32.partialorder %v1745, 20.0
        %vm1917 = vcmp.gt.f32.partialorder %v1771, 20.0
        %vm1918 = vcmp.gt.f32.partialorder %v1797, 20.0
        %v1919 = vsel %vm1907, %v1713, %v1895
        %v1920 = vsel %vm1908, %v1739, %v1896
        %v1921 = vsel %vm1909, %v1765, %v1897
        %v1922 = vsel %vm1910, %v1791, %v1898
        %v1923 = vsel %vm1911, %v1716, %v1899
        %v1924 = vsel %vm1912, %v1742, %v1900
        %v1925 = vsel %vm1913, %v1768, %v1901
        %v1926 = vsel %vm1914, %v1794, %v1902
        %v1927 = vsel %vm1915, %v1719, %v1903
        %v1928 = vsel %vm1916, %v1745, %v1904
        %v1929 = vsel %vm1917, %v1771, %v1905
        %v1930 = vsel %vm1918, %v1797, %v1906
        %v1931 = vld [vmem:[%s9] sm:$0x1]
        %v1932 = vld [vmem:[#allocation2] sm:$0x1]
        %1934 = vset.pattern.permute.xlu0 0
        %1935 = vperm.xlu0 %1934, %v1932
        %v1936 = vpop.permute.xlu0 %1935
        %v1938 = vperm.slane %v1936, 0
        %v1940 = vsel %vm975, %v1931, 0
        %1942 = vmatpush.msra.mxu0 0.0
        %1943 = vmatpush.msra.mxu0 0.0
        %1944 = vmatpush.msra.mxu0 0.0
        %1945 = vmatpush.msra.mxu0 0.0
        %1946 = vmatpush.msra.mxu0 0.0
        %1947 = vmatpush.msra.mxu0 0.0
        %1948 = vmatpush.msra.mxu0 0.0
        %1949 = vmatpush.msra.mxu0 0.0
        %1950 = vmatpush.msra.mxu0 0.0
        %1951 = vmatpush.msra.mxu0 0.0
        %1952 = vmatpush.msra.mxu0 0.0
        %1953 = vmatpush.msra.mxu0 0.0
        %1954 = vmatpush.msra.mxu0 0.0
        %1955 = vmatpush.msra.mxu0 %v1927
        %1956 = vmatpush.msra.mxu0 %v1923
        %1957 = vmatpush.msra.mxu0 %v1919
        %1958 = vmatmul.f32.gmra.mxu0 %v1940
        %v1959 = vpop.f32.mrf.mxu0
        %v1960 = vadd.f32 %v1938, %v1959
        %1961 = vdwg.mxu0
        %1962 = vmatpush.msra.mxu0 0.0
        %1963 = vmatpush.msra.mxu0 0.0
        %1964 = vmatpush.msra.mxu0 0.0
        %1965 = vmatpush.msra.mxu0 0.0
        %1966 = vmatpush.msra.mxu0 0.0
        %1967 = vmatpush.msra.mxu0 0.0
        %1968 = vmatpush.msra.mxu0 0.0
        %1969 = vmatpush.msra.mxu0 0.0
        %1970 = vmatpush.msra.mxu0 0.0
        %1971 = vmatpush.msra.mxu0 0.0
        %1972 = vmatpush.msra.mxu0 0.0
        %1973 = vmatpush.msra.mxu0 0.0
        %1974 = vmatpush.msra.mxu0 0.0
        %1975 = vmatpush.msra.mxu0 %v1928
        %1976 = vmatpush.msra.mxu0 %v1924
        %1977 = vmatpush.msra.mxu0 %v1920
        %1978 = vmatmul.f32.gmra.mxu0 %v1940
        %v1979 = vpop.f32.mrf.mxu0
        %v1980 = vadd.f32 %v1938, %v1979
        %1981 = vdwg.mxu0
        %1982 = vmatpush.msra.mxu0 0.0
        %1983 = vmatpush.msra.mxu0 0.0
        %1984 = vmatpush.msra.mxu0 0.0
        %1985 = vmatpush.msra.mxu0 0.0
        %1986 = vmatpush.msra.mxu0 0.0
        %1987 = vmatpush.msra.mxu0 0.0
        %1988 = vmatpush.msra.mxu0 0.0
        %1989 = vmatpush.msra.mxu0 0.0
        %1990 = vmatpush.msra.mxu0 0.0
        %1991 = vmatpush.msra.mxu0 0.0
        %1992 = vmatpush.msra.mxu0 0.0
        %1993 = vmatpush.msra.mxu0 0.0
        %1994 = vmatpush.msra.mxu0 0.0
        %1995 = vmatpush.msra.mxu0 %v1929
        %1996 = vmatpush.msra.mxu0 %v1925
        %1997 = vmatpush.msra.mxu0 %v1921
        %1998 = vmatmul.f32.gmra.mxu0 %v1940
        %v1999 = vpop.f32.mrf.mxu0
        %v2000 = vadd.f32 %v1938, %v1999
        %2001 = vdwg.mxu0
        %2002 = vmatpush.msra.mxu0 0.0
        %2003 = vmatpush.msra.mxu0 0.0
        %2004 = vmatpush.msra.mxu0 0.0
        %2005 = vmatpush.msra.mxu0 0.0
        %2006 = vmatpush.msra.mxu0 0.0
        %2007 = vmatpush.msra.mxu0 0.0
        %2008 = vmatpush.msra.mxu0 0.0
        %2009 = vmatpush.msra.mxu0 0.0
        %2010 = vmatpush.msra.mxu0 0.0
        %2011 = vmatpush.msra.mxu0 0.0
        %2012 = vmatpush.msra.mxu0 0.0
        %2013 = vmatpush.msra.mxu0 0.0
        %2014 = vmatpush.msra.mxu0 0.0
        %2015 = vmatpush.msra.mxu0 %v1930
        %2016 = vmatpush.msra.mxu0 %v1926
        %2017 = vmatpush.msra.mxu0 %v1922
        %2018 = vmatmul.f32.gmra.mxu0 %v1940
        %v2019 = vpop.f32.mrf.mxu0
        %v2020 = vadd.f32 %v1938, %v2019
        %2021 = vdwg.mxu0
        %v2026 = vrot.slane %v1980, 7
        %v2027 = vrot.slane %v2000, 6
        %v2028 = vrot.slane %v2020, 5
        %vm2029 = vcmask 1040384
        %v2030 = vsel %vm2029, %v1960, %v2026
        %vm2031 = vcmask 1042434
        %v2032 = vsel %vm2031, %v2027, %v2028
        %vm2033 = vcmask 1041408
        %v2034 = vsel %vm2033, %v2030, %v2032
        %v2036 = vlaneseq
        %vm2037 = vcmp.ge.s32.totalorder %v2036, 0
        %vm2038 = vcmp.lt.s32.totalorder %v2036, 512
        %vm2039 = vmand %vm2037, %vm2038
        %2040 = vst.msk [vmem:[%s394] sm:$0xf] %vm2039, %v2034
        %s2041 = sand.u32 %s271, 1
        %s2042 = scalar_lea.sflag [#allocation4], %s2041
        %s2043 = sand.u32 %s271, 1
        %s2044 = smul.addr %s2043, 4
        %s2045 = scalar_lea.vmem [#allocation3], %s2044
        // Predicated region
        $region65: #{kaoshung_features7_nn.1} parent=63 // pred_check
          %p2046 = pneg %p281
        $region66: #{kaoshung_features7_nn.1} parent=63 // pred_check_branch
          %2048 = sbr.rel (%p2046) target = $region68
        $region67: #{kaoshung_features7_nn.1} parent=63 // pred_region
          %s2049 = smul.u32 4, %s27
          %2051 = vsyncadd %s2042, 0
          %s2052 = scalar_lea.hbm %s11, %s2049
          %s2054 = sshll.u32 %s2045, 4
          %s2055 = int_to_ptr.vmem [resolvable:$true] %s2054
          %s2056 = sshll.u32 %s2052, 4
          %s2057 = int_to_ptr.hbm [resolvable:$true] %s2056
          %2059 = dma.vmem_to_hbm [thread:$0]  %s2055, 64, %s2057, %s2042
        $region68: #{kaoshung_features7_nn.1} parent=63 // pred_fallthru
          _
      $region64: #{kaoshung_features7_nn.1} parent=5 // pred_fallthru
        _
      %p2060 = scmp.le.s32.totalorder 2, %s22
      // Predicated region
      $region69: #{kaoshung_features7_nn.1} parent=5 // pred_check
        %p2061 = pneg %p2060
      $region70: #{kaoshung_features7_nn.1} parent=5 // pred_check_branch
        %2063 = sbr.rel (%p2061) target = $region72
      $region71: #{kaoshung_features7_nn.1} parent=5 // pred_region
        %s2064 = ssub.s32 %s22, 2
        // Predicated region
        $region73: #{kaoshung_features7_nn.1} parent=71 // pred_check
          %p2065 = pneg %p287
        $region74: #{kaoshung_features7_nn.1} parent=71 // pred_check_branch
          %2067 = sbr.rel (%p2065) target = $region76
        $region75: #{kaoshung_features7_nn.1} parent=71 // pred_region
          %s2068 = sand.u32 %s272, 1
          %s2069 = scalar_lea.sflag [#allocation4], %s2068
          %s2070 = sand.u32 %s272, 1
          %s2071 = smul.addr %s2070, 4
          %s2072 = scalar_lea.vmem [#allocation3], %s2071
          %2074 = dma.done %s2069, 64
        $region76: #{kaoshung_features7_nn.1} parent=71 // pred_fallthru
          _
      $region72: #{kaoshung_features7_nn.1} parent=5 // pred_fallthru
        _
    $region6: #{kaoshung_features7_nn.1} parent=1 // loop_footer
      %s26 = sadd.s32 1, %s22
    $region7: #{kaoshung_features7_nn.1} parent=1 // loop_footer_branch
      %21 = sbr.rel target = $region3
    $region8: #{kaoshung_features7_nn.1} parent=1 // loop_exit
      _
    %2075 = vsyncpa [#allocation4], 1
    %s2076 = scalar_lea.sflag [#allocation4], 1
    %2077 = vsyncpa %s2076, 1

</llo_original>
